<compile_context>
chip_gen: v6e
topology: v6e:2x2x1
jax: 0.10.0
libtpu: 0.0.40
codegen_flags: <defaults>
</compile_context>

<pallas_src>
import jax
import jax.numpy as jnp
from jax.experimental import pallas as pl
from jax.experimental.pallas import tpu as pltpu


_EDGE_TYPES = (
    ("ingredient", "co_occurs_with", "direction"),
    ("ingredient", "used_in", "direction"),
    ("direction", "contains", "ingredient"),
    ("direction", "pairs_with", "direction"),
    ("direction", "follows", "direction"),
)

_LANE = 128   # lane width (last dim)
_SUB = 8      # sublane width (second-to-last dim)
_NEG = -1e30  # additive mask value


def _round_up(x, m):
    return ((x + m - 1) // m) * m


def _pad2(a, rows, cols):
    a = jnp.asarray(a, jnp.float32)
    return jnp.pad(a, ((0, rows - a.shape[0]), (0, cols - a.shape[1])))


# ----------------------------------------------------------------------------
# Kernel
# ----------------------------------------------------------------------------
def _han_encoder_kernel(
    x_ing_ref, x_dir_ref,                       # padded node features (bf16)
    wpi_ref, bpi_ref, wpd_ref, bpd_ref,         # per-node-type projections (pre-T)
    v_ing_ref, v_dir_ref,                       # (Hp, 128) stacked attn vectors
    b_co_ref, b_ui_ref, b_ct_ref, b_pw_ref, b_fl_ref,   # additive masks 0/-1e30
    rnz_dir_ref, rnz_ing_ref,                   # per-dst "has in-edge" indicators
    msem_ref, mpool_ing_ref,                    # masked-mean rows (1/n baked in)
    q_ref, wk_ref, bk_ref,                      # semantic attention params
    cond_ref,                                   # (1, Cp)
    wh_i_ref, wh_d_ref, wh_c_ref, bh_ref,       # fused [fc_mu | fc_logvar] heads
    out_ref,                                    # (1, 2*Lp)
):
    f32, bf16 = jnp.float32, jnp.bfloat16

    # Node-type projections: bf16 MXU operands, f32 accumulation.
    h_ing = jnp.dot(x_ing_ref[...], wpi_ref[...],
                    preferred_element_type=f32) + bpi_ref[...]
    h_dir = jnp.dot(x_dir_ref[...], wpd_ref[...],
                    preferred_element_type=f32) + bpd_ref[...]
    h_ing_bf = h_ing.astype(bf16)
    h_dir_bf = h_dir.astype(bf16)

    # All per-node GAT attention scores in two MXU matmuls (instead of ten
    # cross-lane XLU reductions); one transpose per source node type.
    s_ing = jnp.dot(h_ing_bf, v_ing_ref[...], preferred_element_type=f32)  # (Nip,128)
    s_dir = jnp.dot(h_dir_bf, v_dir_ref[...], preferred_element_type=f32)  # (Ndp,128)
    s_ing_t = s_ing.T                                                      # (128,Nip)
    s_dir_t = s_dir.T                                                      # (128,Ndp)

    def edge_attention(a_dst_col, a_src_row, bias, h_src_bf, rownz):
        """GAT edge attention as dense masked softmax, normalized post-matmul."""
        raw = a_dst_col + a_src_row                        # (Nd, Ns)
        raw = jnp.maximum(raw, 0.2 * raw)                  # leaky_relu(0.2)
        logits = raw + bias.astype(f32)                    # additive mask (0 / -1e30)
        row_max = jnp.max(logits, axis=-1, keepdims=True)
        p = jnp.exp(logits - row_max)                      # masked entries underflow to 0
        denom = jnp.sum(p, axis=-1, keepdims=True)         # >= 1 for real rows
        agg = jnp.dot(p.astype(bf16), h_src_bf, preferred_element_type=f32)
        inv = pl.reciprocal(denom, approx=True) * rownz    # zero-in-degree rows -> 0
        return jnp.maximum(agg * inv, 0.0)                 # relu

    # v_ing cols: [0]=asrc_co [1]=asrc_ui [2]=adst_ct
    # v_dir cols: [0]=asrc_ct [1]=asrc_pw [2]=asrc_fl [3]=adst_co [4]=adst_ui
    #             [5]=adst_pw [6]=adst_fl
    o_co = edge_attention(s_dir[:, 3:4], s_ing_t[0:1, :], b_co_ref[...],
                          h_ing_bf, rnz_dir_ref[:, 0:1])
    o_ui = edge_attention(s_dir[:, 4:5], s_ing_t[1:2, :], b_ui_ref[...],
                          h_ing_bf, rnz_dir_ref[:, 1:2])
    o_ct = edge_attention(s_ing[:, 2:3], s_dir_t[0:1, :], b_ct_ref[...],
                          h_dir_bf, rnz_ing_ref[...])
    o_pw = edge_attention(s_dir[:, 5:6], s_dir_t[1:2, :], b_pw_ref[...],
                          h_dir_bf, rnz_dir_ref[:, 2:3])
    o_fl = edge_attention(s_dir[:, 6:7], s_dir_t[2:3, :], b_fl_ref[...],
                          h_dir_bf, rnz_dir_ref[:, 3:4])

    # Semantic attention over the 4 edge types ending at 'direction', batched:
    # one (4*Ndp, Hp) @ wk matmul, one tanh pass, masked means as MXU matvecs.
    o_cat = jnp.concatenate([o_co, o_ui, o_pw, o_fl], axis=0)            # (4*Ndp,Hp)
    o_cat_bf = o_cat.astype(bf16)
    t = jnp.tanh(jnp.dot(o_cat_bf, wk_ref[...],
                         preferred_element_type=f32) + bk_ref[...])      # (4*Ndp,Hp)
    msem = msem_ref[...]                                                 # (8, 4*Ndp)
    means = jnp.dot(msem, t.astype(bf16), preferred_element_type=f32)    # (8, Hp)
    pools = jnp.dot(msem, o_cat_bf, preferred_element_type=f32)          # (8, Hp)

    sc = jnp.sum(means * q_ref[...], axis=-1, keepdims=True)             # (8, 1)
    sc4 = sc[0:4, :]
    sc_max = jnp.max(sc4, axis=0, keepdims=True)
    e = jnp.exp(sc4 - sc_max)                                            # (4, 1)
    w = e * pl.reciprocal(jnp.sum(e, axis=0, keepdims=True), approx=True)

    # dir_pool = mean_n( sum_e w_e * o_e ) = sum_e w_e * mean_n(o_e)
    dir_pool = (w[0:1, :] * pools[0:1, :] + w[1:2, :] * pools[1:2, :]
                + w[2:3, :] * pools[2:3, :] + w[3:4, :] * pools[3:4, :])  # (1, Hp)

    # 'ingredient' receives a single edge type -> its semantic softmax weight is 1.
    ing_pool = jnp.dot(mpool_ing_ref[...], o_ct.astype(bf16),
                       preferred_element_type=f32)                       # (1, Hp)

    # Fused fc_mu / fc_logvar:  graph_repr @ [Wmu | Wlv]^T  (split in the wrapper).
    head = (jnp.dot(ing_pool.astype(bf16), wh_i_ref[...], preferred_element_type=f32)
            + jnp.dot(dir_pool.astype(bf16), wh_d_ref[...], preferred_element_type=f32)
            + jnp.dot(cond_ref[...], wh_c_ref[...], preferred_element_type=f32)
            + bh_ref[...])
    out_ref[...] = head.astype(out_ref.dtype)


# ----------------------------------------------------------------------------
# Wrapper: operand preparation (hoistable, once per graph/params) + kernel run
# ----------------------------------------------------------------------------
def prepare_han_operands(x_ing, x_dir, edge_index_dict, cond, params):
    """Build all padded / pre-transposed / dense-mask kernel operands.

    For a static graph and fixed params this should be called once and the
    result reused across forward calls (hoists the O(N^2) dense scatters and
    the weight transpose/pad/fusion out of the per-call path).
    """
    n_ing, f_ing = x_ing.shape
    n_dir, f_dir = x_dir.shape
    hidden = params["proj_ing_w"].shape[0]
    latent = params["mu_w"].shape[0]
    cdim = cond.shape[0]

    nip, ndp = _round_up(n_ing, _SUB), _round_up(n_dir, _SUB)
    fip, fdp = _round_up(f_ing, _LANE), _round_up(f_dir, _LANE)
    hp = _round_up(hidden, _LANE)   # (pad to 256 on v6e/v7x once hidden > 128)
    cp = _round_up(cdim, _LANE)
    lp = _round_up(latent, _LANE)

    bf16 = jnp.bfloat16

    # Node features (zero-padded, bf16 MXU operands).
    x_ing_p = _pad2(x_ing, nip, fip).astype(bf16)
    x_dir_p = _pad2(x_dir, ndp, fdp).astype(bf16)

    # Projections, pre-transposed: x @ W^T == x @ (W.T).
    wpi = _pad2(params["proj_ing_w"].T, fip, hp).astype(bf16)
    bpi = _pad2(params["proj_ing_b"][None, :], 1, hp)
    wpd = _pad2(params["proj_dir_w"].T, fdp, hp).astype(bf16)
    bpd = _pad2(params["proj_dir_b"][None, :], 1, hp)

    # Per-node-type attention score matrices (columns = edge-type attn vectors).
    def attvec(d, et):
        return jnp.pad(jnp.asarray(params[d][et], jnp.float32), (0, hp - hidden))

    v_ing = jnp.zeros((hp, _LANE), jnp.float32)
    v_ing = v_ing.at[:, 0].set(attvec("att_src", _EDGE_TYPES[0]))
    v_ing = v_ing.at[:, 1].set(attvec("att_src", _EDGE_TYPES[1]))
    v_ing = v_ing.at[:, 2].set(attvec("att_dst", _EDGE_TYPES[2]))
    v_ing = v_ing.astype(bf16)

    v_dir = jnp.zeros((hp, _LANE), jnp.float32)
    v_dir = v_dir.at[:, 0].set(attvec("att_src", _EDGE_TYPES[2]))
    v_dir = v_dir.at[:, 1].set(attvec("att_src", _EDGE_TYPES[3]))
    v_dir = v_dir.at[:, 2].set(attvec("att_src", _EDGE_TYPES[4]))
    v_dir = v_dir.at[:, 3].set(attvec("att_dst", _EDGE_TYPES[0]))
    v_dir = v_dir.at[:, 4].set(attvec("att_dst", _EDGE_TYPES[1]))
    v_dir = v_dir.at[:, 5].set(attvec("att_dst", _EDGE_TYPES[3]))
    v_dir = v_dir.at[:, 6].set(attvec("att_dst", _EDGE_TYPES[4]))
    v_dir = v_dir.astype(bf16)

    # Additive attention-mask biases (0 for edges, -1e30 elsewhere; bf16) and
    # per-dst "has at least one in-edge" indicators.
    # NOTE: duplicate (src,dst) edges collapse to one in the dense recast; the
    # sparse reference would count multi-edges separately.
    pad_of = {"ingredient": nip, "direction": ndp}
    biases, rownz = [], []
    for et in _EDGE_TYPES:
        src_t, _, dst_t = et
        ei = jnp.asarray(edge_index_dict[et], jnp.int32)
        b = jnp.full((pad_of[dst_t], pad_of[src_t]), _NEG, jnp.float32)
        biases.append(b.at[ei[1], ei[0]].set(0.0).astype(bf16))
        deg = jnp.zeros((pad_of[dst_t],), jnp.float32).at[ei[1]].add(1.0)
        rownz.append((deg > 0).astype(jnp.float32)[:, None])
    rnz_dir = jnp.concatenate([rownz[0], rownz[1], rownz[3], rownz[4]], axis=1)
    rnz_ing = rownz[2]

    # Masked-mean rows (1/n baked in) so means/pools become MXU matvecs.
    dir_valid = (jnp.arange(ndp) < n_dir).astype(jnp.float32) / n_dir
    msem = jnp.zeros((_SUB, 4 * ndp), jnp.float32)
    for e in range(4):
        msem = msem.at[e, e * ndp:(e + 1) * ndp].set(dir_valid)
    msem = msem.astype(bf16)
    mpool_ing = ((jnp.arange(nip) < n_ing).astype(jnp.float32) / n_ing)[None, :]
    mpool_ing = mpool_ing.astype(bf16)

    # Semantic attention params.
    qv = _pad2(params["q"][None, :], 1, hp)
    wk = _pad2(params["k_w"].T, hp, hp).astype(bf16)
    bk = _pad2(params["k_b"][None, :], 1, hp)

    cond_p = _pad2(cond[None, :], 1, cp).astype(bf16)

    # Fused [fc_mu | fc_logvar] heads, split per graph_repr segment so no
    # in-kernel concat is needed.
    mu_w, lv_w = params["mu_w"], params["lv_w"]

    def head_block(lo, hi, rows_p):
        wm = _pad2(mu_w[:, lo:hi].T, rows_p, lp)
        wl = _pad2(lv_w[:, lo:hi].T, rows_p, lp)
        return jnp.concatenate([wm, wl], axis=1).astype(bf16)   # (rows_p, 2*lp)

    wh_i = head_block(0, hidden, hp)
    wh_d = head_block(hidden, 2 * hidden, hp)
    wh_c = head_block(2 * hidden, 2 * hidden + cdim, cp)
    bh = jnp.concatenate([_pad2(params["mu_b"][None, :], 1, lp),
                          _pad2(params["lv_b"][None, :], 1, lp)], axis=1)

    operands = (x_ing_p, x_dir_p, wpi, bpi, wpd, bpd, v_ing, v_dir,
                biases[0], biases[1], biases[2], biases[3], biases[4],
                rnz_dir, rnz_ing, msem, mpool_ing,
                qv, wk, bk, cond_p, wh_i, wh_d, wh_c, bh)
    return operands, (latent, lp)


def run_han_encoder(operands, dims):
    latent, lp = dims
    out = pl.pallas_call(
        _han_encoder_kernel,
        out_shape=jax.ShapeDtypeStruct((1, 2 * lp), jnp.float32),
        compiler_params=pltpu.CompilerParams(vmem_limit_bytes=32 * 1024 * 1024),
    )(*operands)
    mu = out[:, :latent]
    logvar = out[:, lp:lp + latent]
    return mu, logvar


def hetero_encoder_han_forward(x_ing, x_dir, edge_index_dict, cond, params):
    operands, dims = prepare_han_operands(x_ing, x_dir, edge_index_dict, cond, params)
    return run_han_encoder(operands, dims)


# ----------------------------------------------------------------------------
# Pure-JAX reference (sparse segment-op formulation, independent of the kernel)
# ----------------------------------------------------------------------------
def _reference_forward(x_ing, x_dir, edge_index_dict, cond, params):
    h = {"ingredient": x_ing @ params["proj_ing_w"].T + params["proj_ing_b"],
         "direction": x_dir @ params["proj_dir_w"].T + params["proj_dir_b"]}
    n_nodes = {"ingredient": x_ing.shape[0], "direction": x_dir.shape[0]}

    outs = {"ingredient": [], "direction": []}
    for et in _EDGE_TYPES:
        src_t, _, dst_t = et
        ei = jnp.asarray(edge_index_dict[et], jnp.int32)
        src, dst = ei[0], ei[1]
        h_src, h_dst = h[src_t], h[dst_t]
        a_s = (h_src * params["att_src"][et]).sum(-1)
        a_d = (h_dst * params["att_dst"][et]).sum(-1)
        alpha = a_s[src] + a_d[dst]
        alpha = jnp.where(alpha >= 0, alpha, 0.2 * alpha)
        nd = n_nodes[dst_t]
        amax = jax.ops.segment_max(alpha, dst, num_segments=nd)
        e = jnp.exp(alpha - amax[dst])
        den = jax.ops.segment_sum(e, dst, num_segments=nd)
        w = e / den[dst]
        agg = jax.ops.segment_sum(h_src[src] * w[:, None], dst, num_segments=nd)
        outs[dst_t].append(jax.nn.relu(agg))

    def group(xs):
        stacked = jnp.stack(xs)                                   # (E, N, hidden)
        t = jnp.tanh(stacked @ params["k_w"].T + params["k_b"])
        score = (params["q"] * t.mean(axis=1)).sum(-1)            # (E,)
        attn = jax.nn.softmax(score)
        return (attn[:, None, None] * stacked).sum(0)

    x_out = {k: group(v) for k, v in outs.items()}
    g = jnp.concatenate([x_out["ingredient"].mean(0, keepdims=True),
                         x_out["direction"].mean(0, keepdims=True),
                         cond[None, :]], axis=1)
    mu = g @ params["mu_w"].T + params["mu_b"]
    logvar = g @ params["lv_w"].T + params["lv_b"]
    return mu, logvar


# ----------------------------------------------------------------------------
# Parameter init (PyTorch Linear conventions: W[out, in], bias[out])
# ----------------------------------------------------------------------------
def init_params(key, ingre_feat_dim, direc_feat_dim, hidden_dim, latent_dim, cond_dim):
    keys = iter(jax.random.split(key, 32))

    def lin(out_d, in_d):
        bound = float(in_d) ** -0.5
        w = jax.random.uniform(next(keys), (out_d, in_d), jnp.float32, -bound, bound)
        b = jax.random.uniform(next(keys), (out_d,), jnp.float32, -bound, bound)
        return w, b

    p = {}
    p["proj_ing_w"], p["proj_ing_b"] = lin(hidden_dim, ingre_feat_dim)
    p["proj_dir_w"], p["proj_dir_b"] = lin(hidden_dim, direc_feat_dim)
    p["att_src"], p["att_dst"] = {}, {}
    for et in _EDGE_TYPES:
        p["att_src"][et] = 0.3 * jax.random.normal(next(keys), (hidden_dim,), jnp.float32)
        p["att_dst"][et] = 0.3 * jax.random.normal(next(keys), (hidden_dim,), jnp.float32)
    p["q"] = 0.3 * jax.random.normal(next(keys), (hidden_dim,), jnp.float32)
    p["k_w"], p["k_b"] = lin(hidden_dim, hidden_dim)
    p["mu_w"], p["mu_b"] = lin(latent_dim, 2 * hidden_dim + cond_dim)
    p["lv_w"], p["lv_b"] = lin(latent_dim, 2 * hidden_dim + cond_dim)
    return p


if __name__ == "__main__":
    ingre_feat_dim, direc_feat_dim = 16, 8
    hidden_dim, latent_dim, cond_dim = 32, 16, 8
    n_ingre, n_direc = 6, 5

    key = jax.random.PRNGKey(0)
    k_par, k_xi, k_xd, k_c = jax.random.split(key, 4)
    params = init_params(k_par, ingre_feat_dim, direc_feat_dim,
                         hidden_dim, latent_dim, cond_dim)
    x_ing = jax.random.normal(k_xi, (n_ingre, ingre_feat_dim), jnp.float32)
    x_dir = jax.random.normal(k_xd, (n_direc, direc_feat_dim), jnp.float32)
    cond = jax.random.normal(k_c, (cond_dim,), jnp.float32)

    edge_index_dict = {
        ("ingredient", "co_occurs_with", "direction"):
            jnp.array([[0, 1, 2, 3, 4, 5, 0, 2], [0, 0, 1, 2, 3, 4, 2, 3]], jnp.int32),
        ("ingredient", "used_in", "direction"):
            jnp.array([[0, 1, 2, 3, 4, 5], [1, 2, 3, 4, 0, 0]], jnp.int32),
        ("direction", "contains", "ingredient"):
            jnp.array([[0, 1, 2, 3, 4, 0, 1], [0, 1, 2, 3, 4, 5, 5]], jnp.int32),
        ("direction", "pairs_with", "direction"):
            jnp.array([[0, 1, 2, 3], [1, 2, 3, 4]], jnp.int32),   # dir node 0: no in-edges
        ("direction", "follows", "direction"):
            jnp.array([[0, 1, 2, 3, 4], [1, 2, 3, 4, 0]], jnp.int32),
    }

    # Operand prep hoisted out of the per-call path (reusable for a static graph).
    operands, dims = prepare_han_operands(x_ing, x_dir, edge_index_dict, cond, params)
    mu, logvar = run_han_encoder(operands, dims)
    mu, logvar = jax.block_until_ready((mu, logvar))

    mu_ref, lv_ref = _reference_forward(x_ing, x_dir, edge_index_dict, cond, params)
    assert mu.shape == (1, latent_dim) and logvar.shape == (1, latent_dim)
    # bf16 MXU operands + approx reciprocals -> slightly relaxed tolerance.
    assert jnp.allclose(mu, mu_ref, atol=3e-2, rtol=3e-2), "mu mismatch vs reference"
    assert jnp.allclose(logvar, lv_ref, atol=3e-2, rtol=3e-2), "logvar mismatch vs reference"

    print("KERNEL_OK")
</pallas_src>

<mosaic_0001>
module attributes {stable_mosaic.version = 11 : i64} {
  func.func @_han_encoder_kernel(%arg0: memref<8x128xbf16, #tpu.memory_space<vmem>>, %arg1: memref<8x128xbf16, #tpu.memory_space<vmem>>, %arg2: memref<128x128xbf16, #tpu.memory_space<vmem>>, %arg3: memref<1x128xf32, #tpu.memory_space<vmem>>, %arg4: memref<128x128xbf16, #tpu.memory_space<vmem>>, %arg5: memref<1x128xf32, #tpu.memory_space<vmem>>, %arg6: memref<128x128xbf16, #tpu.memory_space<vmem>>, %arg7: memref<128x128xbf16, #tpu.memory_space<vmem>>, %arg8: memref<8x8xbf16, #tpu.memory_space<vmem>>, %arg9: memref<8x8xbf16, #tpu.memory_space<vmem>>, %arg10: memref<8x8xbf16, #tpu.memory_space<vmem>>, %arg11: memref<8x8xbf16, #tpu.memory_space<vmem>>, %arg12: memref<8x8xbf16, #tpu.memory_space<vmem>>, %arg13: memref<8x4xf32, #tpu.memory_space<vmem>>, %arg14: memref<8x1xf32, #tpu.memory_space<vmem>>, %arg15: memref<8x32xbf16, #tpu.memory_space<vmem>>, %arg16: memref<1x8xbf16, #tpu.memory_space<vmem>>, %arg17: memref<1x128xf32, #tpu.memory_space<vmem>>, %arg18: memref<128x128xbf16, #tpu.memory_space<vmem>>, %arg19: memref<1x128xf32, #tpu.memory_space<vmem>>, %arg20: memref<1x128xbf16, #tpu.memory_space<vmem>>, %arg21: memref<128x256xbf16, #tpu.memory_space<vmem>>, %arg22: memref<128x256xbf16, #tpu.memory_space<vmem>>, %arg23: memref<128x256xbf16, #tpu.memory_space<vmem>>, %arg24: memref<1x256xf32, #tpu.memory_space<vmem>>, %arg25: memref<1x256xf32, #tpu.memory_space<vmem>>) attributes {dimension_semantics = [], scalar_prefetch = 0 : i64, scratch_operands = 0 : i64, tpu.core_type = #tpu.core_type<tc>} {
    %c0 = arith.constant 0 : index
    %c0_0 = arith.constant 0 : index
    %0 = vector.load %arg0[%c0, %c0_0] : memref<8x128xbf16, #tpu.memory_space<vmem>>, vector<8x128xbf16>
    %c0_1 = arith.constant 0 : index
    %c0_2 = arith.constant 0 : index
    %1 = vector.load %arg2[%c0_1, %c0_2] : memref<128x128xbf16, #tpu.memory_space<vmem>>, vector<128x128xbf16>
    %cst = arith.constant dense<0.000000e+00> : vector<8x128xf32>
    %2 = tpu.matmul %0, %1, %cst {dimension_numbers = #tpu.dot_dimension_numbers<[1], [0], [0], [1], [0, 0, 1, 1], [], []>} : vector<8x128xbf16>, vector<128x128xbf16>, vector<8x128xf32> -> vector<8x128xf32>
    %c0_3 = arith.constant 0 : index
    %c0_4 = arith.constant 0 : index
    %3 = vector.load %arg3[%c0_3, %c0_4] : memref<1x128xf32, #tpu.memory_space<vmem>>, vector<1x128xf32>
    %4 = vector.broadcast %3 : vector<1x128xf32> to vector<8x128xf32>
    %5 = arith.addf %2, %4 : vector<8x128xf32>
    %c0_5 = arith.constant 0 : index
    %c0_6 = arith.constant 0 : index
    %6 = vector.load %arg1[%c0_5, %c0_6] : memref<8x128xbf16, #tpu.memory_space<vmem>>, vector<8x128xbf16>
    %c0_7 = arith.constant 0 : index
    %c0_8 = arith.constant 0 : index
    %7 = vector.load %arg4[%c0_7, %c0_8] : memref<128x128xbf16, #tpu.memory_space<vmem>>, vector<128x128xbf16>
    %cst_9 = arith.constant dense<0.000000e+00> : vector<8x128xf32>
    %8 = tpu.matmul %6, %7, %cst_9 {dimension_numbers = #tpu.dot_dimension_numbers<[1], [0], [0], [1], [0, 0, 1, 1], [], []>} : vector<8x128xbf16>, vector<128x128xbf16>, vector<8x128xf32> -> vector<8x128xf32>
    %c0_10 = arith.constant 0 : index
    %c0_11 = arith.constant 0 : index
    %9 = vector.load %arg5[%c0_10, %c0_11] : memref<1x128xf32, #tpu.memory_space<vmem>>, vector<1x128xf32>
    %10 = vector.broadcast %9 : vector<1x128xf32> to vector<8x128xf32>
    %11 = arith.addf %8, %10 : vector<8x128xf32>
    %12 = arith.truncf %5 : vector<8x128xf32> to vector<8x128xbf16>
    %13 = arith.truncf %11 : vector<8x128xf32> to vector<8x128xbf16>
    %c0_12 = arith.constant 0 : index
    %c0_13 = arith.constant 0 : index
    %14 = vector.load %arg6[%c0_12, %c0_13] : memref<128x128xbf16, #tpu.memory_space<vmem>>, vector<128x128xbf16>
    %cst_14 = arith.constant dense<0.000000e+00> : vector<8x128xf32>
    %15 = tpu.matmul %12, %14, %cst_14 {dimension_numbers = #tpu.dot_dimension_numbers<[1], [0], [0], [1], [0, 0, 1, 1], [], []>} : vector<8x128xbf16>, vector<128x128xbf16>, vector<8x128xf32> -> vector<8x128xf32>
    %c0_15 = arith.constant 0 : index
    %c0_16 = arith.constant 0 : index
    %16 = vector.load %arg7[%c0_15, %c0_16] : memref<128x128xbf16, #tpu.memory_space<vmem>>, vector<128x128xbf16>
    %cst_17 = arith.constant dense<0.000000e+00> : vector<8x128xf32>
    %17 = tpu.matmul %13, %16, %cst_17 {dimension_numbers = #tpu.dot_dimension_numbers<[1], [0], [0], [1], [0, 0, 1, 1], [], []>} : vector<8x128xbf16>, vector<128x128xbf16>, vector<8x128xf32> -> vector<8x128xf32>
    %18 = tpu.transpose %15, [1, 0] : vector<8x128xf32> -> vector<128x8xf32>
    %19 = tpu.transpose %17, [1, 0] : vector<8x128xf32> -> vector<128x8xf32>
    %20 = vector.extract_strided_slice %17 {offsets = [0, 3], sizes = [8, 1], strides = [1, 1]} : vector<8x128xf32> to vector<8x1xf32>
    %21 = vector.extract_strided_slice %18 {offsets = [0, 0], sizes = [1, 8], strides = [1, 1]} : vector<128x8xf32> to vector<1x8xf32>
    %c0_18 = arith.constant 0 : index
    %c0_19 = arith.constant 0 : index
    %22 = vector.load %arg8[%c0_18, %c0_19] : memref<8x8xbf16, #tpu.memory_space<vmem>>, vector<8x8xbf16>
    %c0_20 = arith.constant 0 : index
    %c0_21 = arith.constant 0 : index
    %23 = vector.load %arg13[%c0_20, %c0_21] : memref<8x4xf32, #tpu.memory_space<vmem>>, vector<8x1xf32>
    %24 = vector.broadcast %20 : vector<8x1xf32> to vector<8x8xf32>
    %25 = vector.broadcast %21 : vector<1x8xf32> to vector<8x8xf32>
    %26 = arith.addf %24, %25 : vector<8x8xf32>
    %cst_22 = arith.constant 2.000000e-01 : f32
    %27 = vector.broadcast %cst_22 : f32 to vector<8x8xf32>
    %28 = arith.mulf %27, %26 : vector<8x8xf32>
    %29 = arith.maximumf %26, %28 : vector<8x8xf32>
    %30 = arith.extf %22 : vector<8x8xbf16> to vector<8x8xf32>
    %31 = arith.addf %29, %30 : vector<8x8xf32>
    %cst_23 = arith.constant dense<0xFF800000> : vector<8xf32>
    %32 = vector.multi_reduction <maximumf>, %31, %cst_23 [1] : vector<8x8xf32> to vector<8xf32>
    %33 = vector.shape_cast %32 : vector<8xf32> to vector<8x1xf32>
    %34 = vector.broadcast %33 : vector<8x1xf32> to vector<8x8xf32>
    %35 = arith.subf %31, %34 : vector<8x8xf32>
    %36 = math.exp %35 : vector<8x8xf32>
    %cst_24 = arith.constant dense<0.000000e+00> : vector<8xf32>
    %37 = vector.multi_reduction <add>, %36, %cst_24 [1] : vector<8x8xf32> to vector<8xf32>
    %38 = vector.shape_cast %37 : vector<8xf32> to vector<8x1xf32>
    %39 = arith.truncf %36 : vector<8x8xf32> to vector<8x8xbf16>
    %cst_25 = arith.constant dense<0.000000e+00> : vector<8x128xf32>
    %40 = tpu.matmul %39, %12, %cst_25 {dimension_numbers = #tpu.dot_dimension_numbers<[1], [0], [0], [1], [0, 0, 1, 1], [], []>} : vector<8x8xbf16>, vector<8x128xbf16>, vector<8x128xf32> -> vector<8x128xf32>
    %41 = tpu.reciprocal %38 {approx = true} : vector<8x1xf32> -> vector<8x1xf32>
    %42 = arith.mulf %41, %23 : vector<8x1xf32>
    %43 = vector.broadcast %42 : vector<8x1xf32> to vector<8x128xf32>
    %44 = arith.mulf %40, %43 : vector<8x128xf32>
    %cst_26 = arith.constant 0.000000e+00 : f32
    %45 = vector.broadcast %cst_26 : f32 to vector<8x128xf32>
    %46 = arith.maximumf %44, %45 : vector<8x128xf32>
    %47 = vector.extract_strided_slice %17 {offsets = [0, 4], sizes = [8, 1], strides = [1, 1]} : vector<8x128xf32> to vector<8x1xf32>
    %48 = vector.extract_strided_slice %18 {offsets = [1, 0], sizes = [1, 8], strides = [1, 1]} : vector<128x8xf32> to vector<1x8xf32>
    %c0_27 = arith.constant 0 : index
    %c0_28 = arith.constant 0 : index
    %49 = vector.load %arg9[%c0_27, %c0_28] : memref<8x8xbf16, #tpu.memory_space<vmem>>, vector<8x8xbf16>
    %c0_29 = arith.constant 0 : index
    %c1 = arith.constant 1 : index
    %50 = vector.load %arg13[%c0_29, %c1] : memref<8x4xf32, #tpu.memory_space<vmem>>, vector<8x1xf32>
    %51 = vector.broadcast %47 : vector<8x1xf32> to vector<8x8xf32>
    %52 = vector.broadcast %48 : vector<1x8xf32> to vector<8x8xf32>
    %53 = arith.addf %51, %52 : vector<8x8xf32>
    %cst_30 = arith.constant 2.000000e-01 : f32
    %54 = vector.broadcast %cst_30 : f32 to vector<8x8xf32>
    %55 = arith.mulf %54, %53 : vector<8x8xf32>
    %56 = arith.maximumf %53, %55 : vector<8x8xf32>
    %57 = arith.extf %49 : vector<8x8xbf16> to vector<8x8xf32>
    %58 = arith.addf %56, %57 : vector<8x8xf32>
    %cst_31 = arith.constant dense<0xFF800000> : vector<8xf32>
    %59 = vector.multi_reduction <maximumf>, %58, %cst_31 [1] : vector<8x8xf32> to vector<8xf32>
    %60 = vector.shape_cast %59 : vector<8xf32> to vector<8x1xf32>
    %61 = vector.broadcast %60 : vector<8x1xf32> to vector<8x8xf32>
    %62 = arith.subf %58, %61 : vector<8x8xf32>
    %63 = math.exp %62 : vector<8x8xf32>
    %cst_32 = arith.constant dense<0.000000e+00> : vector<8xf32>
    %64 = vector.multi_reduction <add>, %63, %cst_32 [1] : vector<8x8xf32> to vector<8xf32>
    %65 = vector.shape_cast %64 : vector<8xf32> to vector<8x1xf32>
    %66 = arith.truncf %63 : vector<8x8xf32> to vector<8x8xbf16>
    %cst_33 = arith.constant dense<0.000000e+00> : vector<8x128xf32>
    %67 = tpu.matmul %66, %12, %cst_33 {dimension_numbers = #tpu.dot_dimension_numbers<[1], [0], [0], [1], [0, 0, 1, 1], [], []>} : vector<8x8xbf16>, vector<8x128xbf16>, vector<8x128xf32> -> vector<8x128xf32>
    %68 = tpu.reciprocal %65 {approx = true} : vector<8x1xf32> -> vector<8x1xf32>
    %69 = arith.mulf %68, %50 : vector<8x1xf32>
    %70 = vector.broadcast %69 : vector<8x1xf32> to vector<8x128xf32>
    %71 = arith.mulf %67, %70 : vector<8x128xf32>
    %cst_34 = arith.constant 0.000000e+00 : f32
    %72 = vector.broadcast %cst_34 : f32 to vector<8x128xf32>
    %73 = arith.maximumf %71, %72 : vector<8x128xf32>
    %74 = vector.extract_strided_slice %15 {offsets = [0, 2], sizes = [8, 1], strides = [1, 1]} : vector<8x128xf32> to vector<8x1xf32>
    %75 = vector.extract_strided_slice %19 {offsets = [0, 0], sizes = [1, 8], strides = [1, 1]} : vector<128x8xf32> to vector<1x8xf32>
    %c0_35 = arith.constant 0 : index
    %c0_36 = arith.constant 0 : index
    %76 = vector.load %arg10[%c0_35, %c0_36] : memref<8x8xbf16, #tpu.memory_space<vmem>>, vector<8x8xbf16>
    %c0_37 = arith.constant 0 : index
    %c0_38 = arith.constant 0 : index
    %77 = vector.load %arg14[%c0_37, %c0_38] : memref<8x1xf32, #tpu.memory_space<vmem>>, vector<8x1xf32>
    %78 = vector.broadcast %74 : vector<8x1xf32> to vector<8x8xf32>
    %79 = vector.broadcast %75 : vector<1x8xf32> to vector<8x8xf32>
    %80 = arith.addf %78, %79 : vector<8x8xf32>
    %cst_39 = arith.constant 2.000000e-01 : f32
    %81 = vector.broadcast %cst_39 : f32 to vector<8x8xf32>
    %82 = arith.mulf %81, %80 : vector<8x8xf32>
    %83 = arith.maximumf %80, %82 : vector<8x8xf32>
    %84 = arith.extf %76 : vector<8x8xbf16> to vector<8x8xf32>
    %85 = arith.addf %83, %84 : vector<8x8xf32>
    %cst_40 = arith.constant dense<0xFF800000> : vector<8xf32>
    %86 = vector.multi_reduction <maximumf>, %85, %cst_40 [1] : vector<8x8xf32> to vector<8xf32>
    %87 = vector.shape_cast %86 : vector<8xf32> to vector<8x1xf32>
    %88 = vector.broadcast %87 : vector<8x1xf32> to vector<8x8xf32>
    %89 = arith.subf %85, %88 : vector<8x8xf32>
    %90 = math.exp %89 : vector<8x8xf32>
    %cst_41 = arith.constant dense<0.000000e+00> : vector<8xf32>
    %91 = vector.multi_reduction <add>, %90, %cst_41 [1] : vector<8x8xf32> to vector<8xf32>
    %92 = vector.shape_cast %91 : vector<8xf32> to vector<8x1xf32>
    %93 = arith.truncf %90 : vector<8x8xf32> to vector<8x8xbf16>
    %cst_42 = arith.constant dense<0.000000e+00> : vector<8x128xf32>
    %94 = tpu.matmul %93, %13, %cst_42 {dimension_numbers = #tpu.dot_dimension_numbers<[1], [0], [0], [1], [0, 0, 1, 1], [], []>} : vector<8x8xbf16>, vector<8x128xbf16>, vector<8x128xf32> -> vector<8x128xf32>
    %95 = tpu.reciprocal %92 {approx = true} : vector<8x1xf32> -> vector<8x1xf32>
    %96 = arith.mulf %95, %77 : vector<8x1xf32>
    %97 = vector.broadcast %96 : vector<8x1xf32> to vector<8x128xf32>
    %98 = arith.mulf %94, %97 : vector<8x128xf32>
    %cst_43 = arith.constant 0.000000e+00 : f32
    %99 = vector.broadcast %cst_43 : f32 to vector<8x128xf32>
    %100 = arith.maximumf %98, %99 : vector<8x128xf32>
    %101 = vector.extract_strided_slice %17 {offsets = [0, 5], sizes = [8, 1], strides = [1, 1]} : vector<8x128xf32> to vector<8x1xf32>
    %102 = vector.extract_strided_slice %19 {offsets = [1, 0], sizes = [1, 8], strides = [1, 1]} : vector<128x8xf32> to vector<1x8xf32>
    %c0_44 = arith.constant 0 : index
    %c0_45 = arith.constant 0 : index
    %103 = vector.load %arg11[%c0_44, %c0_45] : memref<8x8xbf16, #tpu.memory_space<vmem>>, vector<8x8xbf16>
    %c0_46 = arith.constant 0 : index
    %c2 = arith.constant 2 : index
    %104 = vector.load %arg13[%c0_46, %c2] : memref<8x4xf32, #tpu.memory_space<vmem>>, vector<8x1xf32>
    %105 = vector.broadcast %101 : vector<8x1xf32> to vector<8x8xf32>
    %106 = vector.broadcast %102 : vector<1x8xf32> to vector<8x8xf32>
    %107 = arith.addf %105, %106 : vector<8x8xf32>
    %cst_47 = arith.constant 2.000000e-01 : f32
    %108 = vector.broadcast %cst_47 : f32 to vector<8x8xf32>
    %109 = arith.mulf %108, %107 : vector<8x8xf32>
    %110 = arith.maximumf %107, %109 : vector<8x8xf32>
    %111 = arith.extf %103 : vector<8x8xbf16> to vector<8x8xf32>
    %112 = arith.addf %110, %111 : vector<8x8xf32>
    %cst_48 = arith.constant dense<0xFF800000> : vector<8xf32>
    %113 = vector.multi_reduction <maximumf>, %112, %cst_48 [1] : vector<8x8xf32> to vector<8xf32>
    %114 = vector.shape_cast %113 : vector<8xf32> to vector<8x1xf32>
    %115 = vector.broadcast %114 : vector<8x1xf32> to vector<8x8xf32>
    %116 = arith.subf %112, %115 : vector<8x8xf32>
    %117 = math.exp %116 : vector<8x8xf32>
    %cst_49 = arith.constant dense<0.000000e+00> : vector<8xf32>
    %118 = vector.multi_reduction <add>, %117, %cst_49 [1] : vector<8x8xf32> to vector<8xf32>
    %119 = vector.shape_cast %118 : vector<8xf32> to vector<8x1xf32>
    %120 = arith.truncf %117 : vector<8x8xf32> to vector<8x8xbf16>
    %cst_50 = arith.constant dense<0.000000e+00> : vector<8x128xf32>
    %121 = tpu.matmul %120, %13, %cst_50 {dimension_numbers = #tpu.dot_dimension_numbers<[1], [0], [0], [1], [0, 0, 1, 1], [], []>} : vector<8x8xbf16>, vector<8x128xbf16>, vector<8x128xf32> -> vector<8x128xf32>
    %122 = tpu.reciprocal %119 {approx = true} : vector<8x1xf32> -> vector<8x1xf32>
    %123 = arith.mulf %122, %104 : vector<8x1xf32>
    %124 = vector.broadcast %123 : vector<8x1xf32> to vector<8x128xf32>
    %125 = arith.mulf %121, %124 : vector<8x128xf32>
    %cst_51 = arith.constant 0.000000e+00 : f32
    %126 = vector.broadcast %cst_51 : f32 to vector<8x128xf32>
    %127 = arith.maximumf %125, %126 : vector<8x128xf32>
    %128 = vector.extract_strided_slice %17 {offsets = [0, 6], sizes = [8, 1], strides = [1, 1]} : vector<8x128xf32> to vector<8x1xf32>
    %129 = vector.extract_strided_slice %19 {offsets = [2, 0], sizes = [1, 8], strides = [1, 1]} : vector<128x8xf32> to vector<1x8xf32>
    %c0_52 = arith.constant 0 : index
    %c0_53 = arith.constant 0 : index
    %130 = vector.load %arg12[%c0_52, %c0_53] : memref<8x8xbf16, #tpu.memory_space<vmem>>, vector<8x8xbf16>
    %c0_54 = arith.constant 0 : index
    %c3 = arith.constant 3 : index
    %131 = vector.load %arg13[%c0_54, %c3] : memref<8x4xf32, #tpu.memory_space<vmem>>, vector<8x1xf32>
    %132 = vector.broadcast %128 : vector<8x1xf32> to vector<8x8xf32>
    %133 = vector.broadcast %129 : vector<1x8xf32> to vector<8x8xf32>
    %134 = arith.addf %132, %133 : vector<8x8xf32>
    %cst_55 = arith.constant 2.000000e-01 : f32
    %135 = vector.broadcast %cst_55 : f32 to vector<8x8xf32>
    %136 = arith.mulf %135, %134 : vector<8x8xf32>
    %137 = arith.maximumf %134, %136 : vector<8x8xf32>
    %138 = arith.extf %130 : vector<8x8xbf16> to vector<8x8xf32>
    %139 = arith.addf %137, %138 : vector<8x8xf32>
    %cst_56 = arith.constant dense<0xFF800000> : vector<8xf32>
    %140 = vector.multi_reduction <maximumf>, %139, %cst_56 [1] : vector<8x8xf32> to vector<8xf32>
    %141 = vector.shape_cast %140 : vector<8xf32> to vector<8x1xf32>
    %142 = vector.broadcast %141 : vector<8x1xf32> to vector<8x8xf32>
    %143 = arith.subf %139, %142 : vector<8x8xf32>
    %144 = math.exp %143 : vector<8x8xf32>
    %cst_57 = arith.constant dense<0.000000e+00> : vector<8xf32>
    %145 = vector.multi_reduction <add>, %144, %cst_57 [1] : vector<8x8xf32> to vector<8xf32>
    %146 = vector.shape_cast %145 : vector<8xf32> to vector<8x1xf32>
    %147 = arith.truncf %144 : vector<8x8xf32> to vector<8x8xbf16>
    %cst_58 = arith.constant dense<0.000000e+00> : vector<8x128xf32>
    %148 = tpu.matmul %147, %13, %cst_58 {dimension_numbers = #tpu.dot_dimension_numbers<[1], [0], [0], [1], [0, 0, 1, 1], [], []>} : vector<8x8xbf16>, vector<8x128xbf16>, vector<8x128xf32> -> vector<8x128xf32>
    %149 = tpu.reciprocal %146 {approx = true} : vector<8x1xf32> -> vector<8x1xf32>
    %150 = arith.mulf %149, %131 : vector<8x1xf32>
    %151 = vector.broadcast %150 : vector<8x1xf32> to vector<8x128xf32>
    %152 = arith.mulf %148, %151 : vector<8x128xf32>
    %cst_59 = arith.constant 0.000000e+00 : f32
    %153 = vector.broadcast %cst_59 : f32 to vector<8x128xf32>
    %154 = arith.maximumf %152, %153 : vector<8x128xf32>
    %155 = tpu.concatenate %46, %73, %127, %154 in 0 : vector<8x128xf32>, vector<8x128xf32>, vector<8x128xf32>, vector<8x128xf32> -> vector<32x128xf32>
    %156 = arith.truncf %155 : vector<32x128xf32> to vector<32x128xbf16>
    %c0_60 = arith.constant 0 : index
    %c0_61 = arith.constant 0 : index
    %157 = vector.load %arg18[%c0_60, %c0_61] : memref<128x128xbf16, #tpu.memory_space<vmem>>, vector<128x128xbf16>
    %cst_62 = arith.constant dense<0.000000e+00> : vector<32x128xf32>
    %158 = tpu.matmul %156, %157, %cst_62 {dimension_numbers = #tpu.dot_dimension_numbers<[1], [0], [0], [1], [0, 0, 1, 1], [], []>} : vector<32x128xbf16>, vector<128x128xbf16>, vector<32x128xf32> -> vector<32x128xf32>
    %c0_63 = arith.constant 0 : index
    %c0_64 = arith.constant 0 : index
    %159 = vector.load %arg19[%c0_63, %c0_64] : memref<1x128xf32, #tpu.memory_space<vmem>>, vector<1x128xf32>
    %160 = vector.broadcast %159 : vector<1x128xf32> to vector<32x128xf32>
    %161 = arith.addf %158, %160 : vector<32x128xf32>
    %162 = math.tanh %161 : vector<32x128xf32>
    %c0_65 = arith.constant 0 : index
    %c0_66 = arith.constant 0 : index
    %163 = vector.load %arg15[%c0_65, %c0_66] : memref<8x32xbf16, #tpu.memory_space<vmem>>, vector<8x32xbf16>
    %164 = arith.truncf %162 : vector<32x128xf32> to vector<32x128xbf16>
    %cst_67 = arith.constant dense<0.000000e+00> : vector<8x128xf32>
    %165 = tpu.matmul %163, %164, %cst_67 {dimension_numbers = #tpu.dot_dimension_numbers<[1], [0], [0], [1], [0, 0, 1, 1], [], []>} : vector<8x32xbf16>, vector<32x128xbf16>, vector<8x128xf32> -> vector<8x128xf32>
    %cst_68 = arith.constant dense<0.000000e+00> : vector<8x128xf32>
    %166 = tpu.matmul %163, %156, %cst_68 {dimension_numbers = #tpu.dot_dimension_numbers<[1], [0], [0], [1], [0, 0, 1, 1], [], []>} : vector<8x32xbf16>, vector<32x128xbf16>, vector<8x128xf32> -> vector<8x128xf32>
    %c0_69 = arith.constant 0 : index
    %c0_70 = arith.constant 0 : index
    %167 = vector.load %arg17[%c0_69, %c0_70] : memref<1x128xf32, #tpu.memory_space<vmem>>, vector<1x128xf32>
    %168 = vector.broadcast %167 : vector<1x128xf32> to vector<8x128xf32>
    %169 = arith.mulf %165, %168 : vector<8x128xf32>
    %cst_71 = arith.constant dense<0.000000e+00> : vector<8xf32>
    %170 = vector.multi_reduction <add>, %169, %cst_71 [1] : vector<8x128xf32> to vector<8xf32>
    %171 = vector.shape_cast %170 : vector<8xf32> to vector<8x1xf32>
    %172 = vector.extract_strided_slice %171 {offsets = [0, 0], sizes = [4, 1], strides = [1, 1]} : vector<8x1xf32> to vector<4x1xf32>
    %cst_72 = arith.constant dense<0xFF800000> : vector<1xf32>
    %173 = vector.multi_reduction <maximumf>, %172, %cst_72 [0] : vector<4x1xf32> to vector<1xf32>
    %174 = vector.shape_cast %173 : vector<1xf32> to vector<1x1xf32>
    %175 = vector.broadcast %174 : vector<1x1xf32> to vector<4x1xf32>
    %176 = arith.subf %172, %175 : vector<4x1xf32>
    %177 = math.exp %176 : vector<4x1xf32>
    %cst_73 = arith.constant dense<0.000000e+00> : vector<1xf32>
    %178 = vector.multi_reduction <add>, %177, %cst_73 [0] : vector<4x1xf32> to vector<1xf32>
    %179 = vector.shape_cast %178 : vector<1xf32> to vector<1x1xf32>
    %180 = tpu.reciprocal %179 {approx = true} : vector<1x1xf32> -> vector<1x1xf32>
    %181 = vector.broadcast %180 : vector<1x1xf32> to vector<4x1xf32>
    %182 = arith.mulf %177, %181 : vector<4x1xf32>
    %183 = vector.extract_strided_slice %182 {offsets = [0, 0], sizes = [1, 1], strides = [1, 1]} : vector<4x1xf32> to vector<1x1xf32>
    %184 = vector.extract_strided_slice %166 {offsets = [0, 0], sizes = [1, 128], strides = [1, 1]} : vector<8x128xf32> to vector<1x128xf32>
    %185 = vector.broadcast %183 : vector<1x1xf32> to vector<1x128xf32>
    %186 = arith.mulf %185, %184 : vector<1x128xf32>
    %187 = vector.extract_strided_slice %182 {offsets = [1, 0], sizes = [1, 1], strides = [1, 1]} : vector<4x1xf32> to vector<1x1xf32>
    %188 = vector.extract_strided_slice %166 {offsets = [1, 0], sizes = [1, 128], strides = [1, 1]} : vector<8x128xf32> to vector<1x128xf32>
    %189 = vector.broadcast %187 : vector<1x1xf32> to vector<1x128xf32>
    %190 = arith.mulf %189, %188 : vector<1x128xf32>
    %191 = arith.addf %186, %190 : vector<1x128xf32>
    %192 = vector.extract_strided_slice %182 {offsets = [2, 0], sizes = [1, 1], strides = [1, 1]} : vector<4x1xf32> to vector<1x1xf32>
    %193 = vector.extract_strided_slice %166 {offsets = [2, 0], sizes = [1, 128], strides = [1, 1]} : vector<8x128xf32> to vector<1x128xf32>
    %194 = vector.broadcast %192 : vector<1x1xf32> to vector<1x128xf32>
    %195 = arith.mulf %194, %193 : vector<1x128xf32>
    %196 = arith.addf %191, %195 : vector<1x128xf32>
    %197 = vector.extract_strided_slice %182 {offsets = [3, 0], sizes = [1, 1], strides = [1, 1]} : vector<4x1xf32> to vector<1x1xf32>
    %198 = vector.extract_strided_slice %166 {offsets = [3, 0], sizes = [1, 128], strides = [1, 1]} : vector<8x128xf32> to vector<1x128xf32>
    %199 = vector.broadcast %197 : vector<1x1xf32> to vector<1x128xf32>
    %200 = arith.mulf %199, %198 : vector<1x128xf32>
    %201 = arith.addf %196, %200 : vector<1x128xf32>
    %c0_74 = arith.constant 0 : index
    %c0_75 = arith.constant 0 : index
    %202 = vector.load %arg16[%c0_74, %c0_75] : memref<1x8xbf16, #tpu.memory_space<vmem>>, vector<1x8xbf16>
    %203 = arith.truncf %100 : vector<8x128xf32> to vector<8x128xbf16>
    %cst_76 = arith.constant dense<0.000000e+00> : vector<1x128xf32>
    %204 = tpu.matmul %202, %203, %cst_76 {dimension_numbers = #tpu.dot_dimension_numbers<[1], [0], [0], [1], [0, 0, 1, 1], [], []>} : vector<1x8xbf16>, vector<8x128xbf16>, vector<1x128xf32> -> vector<1x128xf32>
    %205 = arith.truncf %204 : vector<1x128xf32> to vector<1x128xbf16>
    %c0_77 = arith.constant 0 : index
    %c0_78 = arith.constant 0 : index
    %206 = vector.load %arg21[%c0_77, %c0_78] : memref<128x256xbf16, #tpu.memory_space<vmem>>, vector<128x256xbf16>
    %cst_79 = arith.constant dense<0.000000e+00> : vector<1x256xf32>
    %207 = tpu.matmul %205, %206, %cst_79 {dimension_numbers = #tpu.dot_dimension_numbers<[1], [0], [0], [1], [0, 0, 1, 1], [], []>} : vector<1x128xbf16>, vector<128x256xbf16>, vector<1x256xf32> -> vector<1x256xf32>
    %208 = arith.truncf %201 : vector<1x128xf32> to vector<1x128xbf16>
    %c0_80 = arith.constant 0 : index
    %c0_81 = arith.constant 0 : index
    %209 = vector.load %arg22[%c0_80, %c0_81] : memref<128x256xbf16, #tpu.memory_space<vmem>>, vector<128x256xbf16>
    %cst_82 = arith.constant dense<0.000000e+00> : vector<1x256xf32>
    %210 = tpu.matmul %208, %209, %cst_82 {dimension_numbers = #tpu.dot_dimension_numbers<[1], [0], [0], [1], [0, 0, 1, 1], [], []>} : vector<1x128xbf16>, vector<128x256xbf16>, vector<1x256xf32> -> vector<1x256xf32>
    %211 = arith.addf %207, %210 : vector<1x256xf32>
    %c0_83 = arith.constant 0 : index
    %c0_84 = arith.constant 0 : index
    %212 = vector.load %arg20[%c0_83, %c0_84] : memref<1x128xbf16, #tpu.memory_space<vmem>>, vector<1x128xbf16>
    %c0_85 = arith.constant 0 : index
    %c0_86 = arith.constant 0 : index
    %213 = vector.load %arg23[%c0_85, %c0_86] : memref<128x256xbf16, #tpu.memory_space<vmem>>, vector<128x256xbf16>
    %cst_87 = arith.constant dense<0.000000e+00> : vector<1x256xf32>
    %214 = tpu.matmul %212, %213, %cst_87 {dimension_numbers = #tpu.dot_dimension_numbers<[1], [0], [0], [1], [0, 0, 1, 1], [], []>} : vector<1x128xbf16>, vector<128x256xbf16>, vector<1x256xf32> -> vector<1x256xf32>
    %215 = arith.addf %211, %214 : vector<1x256xf32>
    %c0_88 = arith.constant 0 : index
    %c0_89 = arith.constant 0 : index
    %216 = vector.load %arg24[%c0_88, %c0_89] : memref<1x256xf32, #tpu.memory_space<vmem>>, vector<1x256xf32>
    %217 = arith.addf %215, %216 : vector<1x256xf32>
    %c0_90 = arith.constant 0 : index
    %c0_91 = arith.constant 0 : index
    %218 = vector.load %arg25[%c0_90, %c0_91] : memref<1x256xf32, #tpu.memory_space<vmem>>, vector<1x256xf32>
    tpu.vector_store %arg25[%c0_90, %c0_91], %217 {strides = array<i32>} : memref<1x256xf32, #tpu.memory_space<vmem>>, vector<1x256xf32>,
    return
  }
}

</mosaic_0001>

<llo_original>
// kernel: tpu_custom_call.1
$region0: #{tpu_custom_call.1}
  #allocation0 [shape = 'u32[]', space=smem, size = 0x4, offset = 0x4, fixed_abs, tag = 'smem constant byte address 0x4 - core index']
  #allocation1 [shape = 'u32[144,128]{1,0:T(1,128)}', space=vmem, size = 0x12000, scoped, tag = 'internal scratch']
  %s0 = inlined_call_operand.vmem [shape: bf16[8,128], index: 0, kind: input, shape index: {}]
  %s1 = inlined_call_operand.vmem [shape: bf16[8,128], index: 1, kind: input, shape index: {}]
  %s2 = inlined_call_operand.hbm [shape: bf16[128,128], index: 2, kind: input, shape index: {}]
  %s3 = inlined_call_operand.hbm [shape: f32[1,128], index: 3, kind: input, shape index: {}]
  %s4 = inlined_call_operand.hbm [shape: bf16[128,128], index: 4, kind: input, shape index: {}]
  %s5 = inlined_call_operand.hbm [shape: f32[1,128], index: 5, kind: input, shape index: {}]
  %s6 = inlined_call_operand.hbm [shape: bf16[128,128], index: 6, kind: input, shape index: {}]
  %s7 = inlined_call_operand.hbm [shape: bf16[128,128], index: 7, kind: input, shape index: {}]
  %s8 = inlined_call_operand.vmem [shape: bf16[8,8], index: 8, kind: input, shape index: {}]
  %s9 = inlined_call_operand.vmem [shape: bf16[8,8], index: 9, kind: input, shape index: {}]
  %s10 = inlined_call_operand.vmem [shape: bf16[8,8], index: 10, kind: input, shape index: {}]
  %s11 = inlined_call_operand.vmem [shape: bf16[8,8], index: 11, kind: input, shape index: {}]
  %s12 = inlined_call_operand.vmem [shape: bf16[8,8], index: 12, kind: input, shape index: {}]
  %s13 = inlined_call_operand.vmem [shape: f32[8,4], index: 13, kind: input, shape index: {}]
  %s14 = inlined_call_operand.vmem [shape: f32[8,1], index: 14, kind: input, shape index: {}]
  %s15 = inlined_call_operand.vmem [shape: bf16[8,32], index: 15, kind: input, shape index: {}]
  %s16 = inlined_call_operand.vmem [shape: bf16[1,8], index: 16, kind: input, shape index: {}]
  %s17 = inlined_call_operand.vmem [shape: f32[1,128], index: 17, kind: input, shape index: {}]
  %s18 = inlined_call_operand.hbm [shape: bf16[128,128], index: 18, kind: input, shape index: {}]
  %s19 = inlined_call_operand.vmem [shape: f32[1,128], index: 19, kind: input, shape index: {}]
  %s20 = inlined_call_operand.vmem [shape: bf16[1,128], index: 20, kind: input, shape index: {}]
  %s21 = inlined_call_operand.hbm [shape: bf16[128,256], index: 21, kind: input, shape index: {}]
  %s22 = inlined_call_operand.hbm [shape: bf16[128,256], index: 22, kind: input, shape index: {}]
  %s23 = inlined_call_operand.hbm [shape: bf16[128,256], index: 23, kind: input, shape index: {}]
  %s24 = inlined_call_operand.vmem [shape: f32[1,256], index: 24, kind: input, shape index: {}]
  %s25 = inlined_call_operand.hbm [shape: f32[1,256], index: 25, kind: output, shape index: {}]
  %s26 = sld [smem:[#allocation0]]
  $region150: #{tpu_custom_call.1} parent=0
    _
  %s28 = ssub.s32 1, %s26
  %s29 = scalar_select 0, %s28, %s26
  $region1: #{tpu_custom_call.1} parent=0
    #allocation2 [shape = 'u8[32768]{0}', space=vmem, size = 0x8000, scoped, tag = 'input window, operand 2, single buffered']
    #allocation3 [shape = 's32[1]{0}', space=sflag, size = 0x4, scoped, tag = 'scoped memory for tpu_custom_call.1']
    #allocation4 [shape = 's32[1]{0}', space=sflag, size = 0x4, scoped, tag = 'scoped memory for tpu_custom_call.1']
    #allocation5 [shape = 'u8[512]{0}', space=vmem, size = 0x400, scoped, tag = 'input window, operand 3, single buffered']
    #allocation6 [shape = 's32[1]{0}', space=sflag, size = 0x4, scoped, tag = 'scoped memory for tpu_custom_call.1']
    #allocation7 [shape = 'u8[32768]{0}', space=vmem, size = 0x8000, scoped, tag = 'input window, operand 4, single buffered']
    #allocation8 [shape = 'u8[512]{0}', space=vmem, size = 0x400, scoped, tag = 'input window, operand 5, single buffered']
    #allocation9 [shape = 's32[1]{0}', space=sflag, size = 0x4, scoped, tag = 'scoped memory for tpu_custom_call.1']
    #allocation10 [shape = 'u8[32768]{0}', space=vmem, size = 0x8000, scoped, tag = 'input window, operand 6, single buffered']
    #allocation11 [shape = 'u8[32768]{0}', space=vmem, size = 0x8000, scoped, tag = 'input window, operand 7, single buffered']
    #allocation12 [shape = 's32[1]{0}', space=sflag, size = 0x4, scoped, tag = 'scoped memory for tpu_custom_call.1']
    #allocation13 [shape = 'u8[32768]{0}', space=vmem, size = 0x8000, scoped, tag = 'input window, operand 18, single buffered']
    #allocation14 [shape = 'u8[65536]{0}', space=vmem, size = 0x10000, scoped, tag = 'input window, operand 21, single buffered']
    #allocation15 [shape = 's32[1]{0}', space=sflag, size = 0x4, scoped, tag = 'scoped memory for tpu_custom_call.1']
    #allocation16 [shape = 'u8[65536]{0}', space=vmem, size = 0x10000, scoped, tag = 'input window, operand 22, single buffered']
    #allocation17 [shape = 'u8[65536]{0}', space=vmem, size = 0x10000, scoped, tag = 'input window, operand 23, single buffered']
    #allocation18 [shape = 's32[1]{0}', space=sflag, size = 0x4, scoped, tag = 'scoped memory for tpu_custom_call.1']
    #allocation19 [shape = 'u8[1024]{0}', space=vmem, size = 0x400, scoped, tag = 'output window, operand 0, single buffered']
    %30 = vsyncpa [#allocation3], 0
    %31 = vsyncpa [#allocation6], 0
    %32 = vsyncpa [#allocation9], 0
    %33 = vsyncpa [#allocation12], 0
    %34 = vsyncpa [#allocation15], 0
    %35 = vsyncpa [#allocation18], 0
    %36 = vsyncpa [#allocation4], 0
    // Predicated region
    $region2: #{tpu_custom_call.1} parent=1 // pred_check
      _
    $region3: #{tpu_custom_call.1} parent=1 // pred_check_branch
      %38 = sbr.rel (0) target = $region5
    $region4: #{tpu_custom_call.1} parent=1 // pred_region
      _
    $region5: #{tpu_custom_call.1} parent=1 // pred_fallthru
      _
    // Predicated region
    $region6: #{tpu_custom_call.1} parent=1 // pred_check
      _
    $region7: #{tpu_custom_call.1} parent=1 // pred_check_branch
      %40 = sbr.rel (0) target = $region9
    $region8: #{tpu_custom_call.1} parent=1 // pred_region
      _
    $region9: #{tpu_custom_call.1} parent=1 // pred_fallthru
      _
    // Predicated region
    $region10: #{tpu_custom_call.1} parent=1 // pred_check
      _
    $region11: #{tpu_custom_call.1} parent=1 // pred_check_branch
      %42 = sbr.rel (0) target = $region13
    $region12: #{tpu_custom_call.1} parent=1 // pred_region
      %s44 = ssub.s32 1024, 1024
      %45 = vsyncadd [#allocation3], %s44
      %s46 = sshll.u32 [#allocation2], 4
      %s47 = int_to_ptr.vmem [resolvable:$true] %s46
      %52 = dma.hbm_to_vmem [thread:$0]  %s2, 1024, %s47, [#allocation3], 64, 64, 4
    $region13: #{tpu_custom_call.1} parent=1 // pred_fallthru
      _
    // Predicated region
    $region14: #{tpu_custom_call.1} parent=1 // pred_check
      _
    $region15: #{tpu_custom_call.1} parent=1 // pred_check_branch
      %54 = sbr.rel (0) target = $region17
    $region16: #{tpu_custom_call.1} parent=1 // pred_region
      %s56 = ssub.s32 16, 16
      %57 = vsyncadd [#allocation6], %s56
      %s59 = sshll.u32 [#allocation5], 4
      %s60 = int_to_ptr.vmem [resolvable:$true] %s59
      %62 = dma.hbm_to_vmem [thread:$0]  %s3, 16, %s60, [#allocation6]
    $region17: #{tpu_custom_call.1} parent=1 // pred_fallthru
      _
    // Predicated region
    $region18: #{tpu_custom_call.1} parent=1 // pred_check
      _
    $region19: #{tpu_custom_call.1} parent=1 // pred_check_branch
      %64 = sbr.rel (0) target = $region21
    $region20: #{tpu_custom_call.1} parent=1 // pred_region
      %s66 = ssub.s32 1024, 1024
      %67 = vsyncadd [#allocation6], %s66
      %s68 = sshll.u32 [#allocation7], 4
      %s69 = int_to_ptr.vmem [resolvable:$true] %s68
      %74 = dma.hbm_to_vmem [thread:$0]  %s4, 1024, %s69, [#allocation6], 64, 64, 4
    $region21: #{tpu_custom_call.1} parent=1 // pred_fallthru
      _
    // Predicated region
    $region22: #{tpu_custom_call.1} parent=1 // pred_check
      _
    $region23: #{tpu_custom_call.1} parent=1 // pred_check_branch
      %76 = sbr.rel (0) target = $region25
    $region24: #{tpu_custom_call.1} parent=1 // pred_region
      %s78 = ssub.s32 16, 16
      %79 = vsyncadd [#allocation9], %s78
      %s81 = sshll.u32 [#allocation8], 4
      %s82 = int_to_ptr.vmem [resolvable:$true] %s81
      %84 = dma.hbm_to_vmem [thread:$0]  %s5, 16, %s82, [#allocation9]
    $region25: #{tpu_custom_call.1} parent=1 // pred_fallthru
      _
    // Predicated region
    $region26: #{tpu_custom_call.1} parent=1 // pred_check
      _
    $region27: #{tpu_custom_call.1} parent=1 // pred_check_branch
      %86 = sbr.rel (0) target = $region29
    $region28: #{tpu_custom_call.1} parent=1 // pred_region
      %s88 = ssub.s32 1024, 1024
      %89 = vsyncadd [#allocation9], %s88
      %s90 = sshll.u32 [#allocation10], 4
      %s91 = int_to_ptr.vmem [resolvable:$true] %s90
      %96 = dma.hbm_to_vmem [thread:$0]  %s6, 1024, %s91, [#allocation9], 64, 64, 4
    $region29: #{tpu_custom_call.1} parent=1 // pred_fallthru
      _
    // Predicated region
    $region30: #{tpu_custom_call.1} parent=1 // pred_check
      _
    $region31: #{tpu_custom_call.1} parent=1 // pred_check_branch
      %98 = sbr.rel (0) target = $region33
    $region32: #{tpu_custom_call.1} parent=1 // pred_region
      %s100 = ssub.s32 1024, 1024
      %101 = vsyncadd [#allocation12], %s100
      %s102 = sshll.u32 [#allocation11], 4
      %s103 = int_to_ptr.vmem [resolvable:$true] %s102
      %108 = dma.hbm_to_vmem [thread:$0]  %s7, 1024, %s103, [#allocation12], 64, 64, 4
    $region33: #{tpu_custom_call.1} parent=1 // pred_fallthru
      _
    // Predicated region
    $region34: #{tpu_custom_call.1} parent=1 // pred_check
      _
    $region35: #{tpu_custom_call.1} parent=1 // pred_check_branch
      %110 = sbr.rel (0) target = $region37
    $region36: #{tpu_custom_call.1} parent=1 // pred_region
      _
    $region37: #{tpu_custom_call.1} parent=1 // pred_fallthru
      _
    // Predicated region
    $region38: #{tpu_custom_call.1} parent=1 // pred_check
      _
    $region39: #{tpu_custom_call.1} parent=1 // pred_check_branch
      %112 = sbr.rel (0) target = $region41
    $region40: #{tpu_custom_call.1} parent=1 // pred_region
      _
    $region41: #{tpu_custom_call.1} parent=1 // pred_fallthru
      _
    // Predicated region
    $region42: #{tpu_custom_call.1} parent=1 // pred_check
      _
    $region43: #{tpu_custom_call.1} parent=1 // pred_check_branch
      %114 = sbr.rel (0) target = $region45
    $region44: #{tpu_custom_call.1} parent=1 // pred_region
      _
    $region45: #{tpu_custom_call.1} parent=1 // pred_fallthru
      _
    // Predicated region
    $region46: #{tpu_custom_call.1} parent=1 // pred_check
      _
    $region47: #{tpu_custom_call.1} parent=1 // pred_check_branch
      %116 = sbr.rel (0) target = $region49
    $region48: #{tpu_custom_call.1} parent=1 // pred_region
      _
    $region49: #{tpu_custom_call.1} parent=1 // pred_fallthru
      _
    // Predicated region
    $region50: #{tpu_custom_call.1} parent=1 // pred_check
      _
    $region51: #{tpu_custom_call.1} parent=1 // pred_check_branch
      %118 = sbr.rel (0) target = $region53
    $region52: #{tpu_custom_call.1} parent=1 // pred_region
      _
    $region53: #{tpu_custom_call.1} parent=1 // pred_fallthru
      _
    // Predicated region
    $region54: #{tpu_custom_call.1} parent=1 // pred_check
      _
    $region55: #{tpu_custom_call.1} parent=1 // pred_check_branch
      %120 = sbr.rel (0) target = $region57
    $region56: #{tpu_custom_call.1} parent=1 // pred_region
      _
    $region57: #{tpu_custom_call.1} parent=1 // pred_fallthru
      _
    // Predicated region
    $region58: #{tpu_custom_call.1} parent=1 // pred_check
      _
    $region59: #{tpu_custom_call.1} parent=1 // pred_check_branch
      %122 = sbr.rel (0) target = $region61
    $region60: #{tpu_custom_call.1} parent=1 // pred_region
      _
    $region61: #{tpu_custom_call.1} parent=1 // pred_fallthru
      _
    // Predicated region
    $region62: #{tpu_custom_call.1} parent=1 // pred_check
      _
    $region63: #{tpu_custom_call.1} parent=1 // pred_check_branch
      %124 = sbr.rel (0) target = $region65
    $region64: #{tpu_custom_call.1} parent=1 // pred_region
      _
    $region65: #{tpu_custom_call.1} parent=1 // pred_fallthru
      _
    // Predicated region
    $region66: #{tpu_custom_call.1} parent=1 // pred_check
      _
    $region67: #{tpu_custom_call.1} parent=1 // pred_check_branch
      %126 = sbr.rel (0) target = $region69
    $region68: #{tpu_custom_call.1} parent=1 // pred_region
      _
    $region69: #{tpu_custom_call.1} parent=1 // pred_fallthru
      _
    // Predicated region
    $region70: #{tpu_custom_call.1} parent=1 // pred_check
      _
    $region71: #{tpu_custom_call.1} parent=1 // pred_check_branch
      %128 = sbr.rel (0) target = $region73
    $region72: #{tpu_custom_call.1} parent=1 // pred_region
      _
    $region73: #{tpu_custom_call.1} parent=1 // pred_fallthru
      _
    // Predicated region
    $region74: #{tpu_custom_call.1} parent=1 // pred_check
      _
    $region75: #{tpu_custom_call.1} parent=1 // pred_check_branch
      %130 = sbr.rel (0) target = $region77
    $region76: #{tpu_custom_call.1} parent=1 // pred_region
      %s132 = ssub.s32 1024, 1024
      %133 = vsyncadd [#allocation12], %s132
      %s134 = sshll.u32 [#allocation13], 4
      %s135 = int_to_ptr.vmem [resolvable:$true] %s134
      %140 = dma.hbm_to_vmem [thread:$0]  %s18, 1024, %s135, [#allocation12], 64, 64, 4
    $region77: #{tpu_custom_call.1} parent=1 // pred_fallthru
      _
    // Predicated region
    $region78: #{tpu_custom_call.1} parent=1 // pred_check
      _
    $region79: #{tpu_custom_call.1} parent=1 // pred_check_branch
      %142 = sbr.rel (0) target = $region81
    $region80: #{tpu_custom_call.1} parent=1 // pred_region
      _
    $region81: #{tpu_custom_call.1} parent=1 // pred_fallthru
      _
    // Predicated region
    $region82: #{tpu_custom_call.1} parent=1 // pred_check
      _
    $region83: #{tpu_custom_call.1} parent=1 // pred_check_branch
      %144 = sbr.rel (0) target = $region85
    $region84: #{tpu_custom_call.1} parent=1 // pred_region
      _
    $region85: #{tpu_custom_call.1} parent=1 // pred_fallthru
      _
    // Predicated region
    $region86: #{tpu_custom_call.1} parent=1 // pred_check
      _
    $region87: #{tpu_custom_call.1} parent=1 // pred_check_branch
      %146 = sbr.rel (0) target = $region89
    $region88: #{tpu_custom_call.1} parent=1 // pred_region
      %s148 = ssub.s32 2048, 2048
      %149 = vsyncadd [#allocation15], %s148
      %s150 = sshll.u32 [#allocation14], 4
      %s151 = int_to_ptr.vmem [resolvable:$true] %s150
      %156 = dma.hbm_to_vmem [thread:$0]  %s21, 2048, %s151, [#allocation15], 128, 128, 8
    $region89: #{tpu_custom_call.1} parent=1 // pred_fallthru
      _
    // Predicated region
    $region90: #{tpu_custom_call.1} parent=1 // pred_check
      _
    $region91: #{tpu_custom_call.1} parent=1 // pred_check_branch
      %158 = sbr.rel (0) target = $region93
    $region92: #{tpu_custom_call.1} parent=1 // pred_region
      %s160 = ssub.s32 2048, 2048
      %161 = vsyncadd [#allocation15], %s160
      %s162 = sshll.u32 [#allocation16], 4
      %s163 = int_to_ptr.vmem [resolvable:$true] %s162
      %168 = dma.hbm_to_vmem [thread:$0]  %s22, 2048, %s163, [#allocation15], 128, 128, 8
    $region93: #{tpu_custom_call.1} parent=1 // pred_fallthru
      _
    // Predicated region
    $region94: #{tpu_custom_call.1} parent=1 // pred_check
      _
    $region95: #{tpu_custom_call.1} parent=1 // pred_check_branch
      %170 = sbr.rel (0) target = $region97
    $region96: #{tpu_custom_call.1} parent=1 // pred_region
      %s172 = ssub.s32 2048, 2048
      %173 = vsyncadd [#allocation18], %s172
      %s174 = sshll.u32 [#allocation17], 4
      %s175 = int_to_ptr.vmem [resolvable:$true] %s174
      %180 = dma.hbm_to_vmem [thread:$0]  %s23, 2048, %s175, [#allocation18], 128, 128, 8
    $region97: #{tpu_custom_call.1} parent=1 // pred_fallthru
      _
    // Predicated region
    $region98: #{tpu_custom_call.1} parent=1 // pred_check
      _
    $region99: #{tpu_custom_call.1} parent=1 // pred_check_branch
      %182 = sbr.rel (0) target = $region101
    $region100: #{tpu_custom_call.1} parent=1 // pred_region
      _
    $region101: #{tpu_custom_call.1} parent=1 // pred_fallthru
      _
    // Predicated region
    $region102: #{tpu_custom_call.1} parent=1 // pred_check
      _
    $region103: #{tpu_custom_call.1} parent=1 // pred_check_branch
      %184 = sbr.rel (0) target = $region105
    $region104: #{tpu_custom_call.1} parent=1 // pred_region
      %185 = dma.done [#allocation3], 1024
    $region105: #{tpu_custom_call.1} parent=1 // pred_fallthru
      _
    // Predicated region
    $region106: #{tpu_custom_call.1} parent=1 // pred_check
      _
    $region107: #{tpu_custom_call.1} parent=1 // pred_check_branch
      %187 = sbr.rel (0) target = $region109
    $region108: #{tpu_custom_call.1} parent=1 // pred_region
      %188 = dma.done [#allocation6], 16
    $region109: #{tpu_custom_call.1} parent=1 // pred_fallthru
      _
    // Predicated region
    $region110: #{tpu_custom_call.1} parent=1 // pred_check
      _
    $region111: #{tpu_custom_call.1} parent=1 // pred_check_branch
      %190 = sbr.rel (0) target = $region113
    $region112: #{tpu_custom_call.1} parent=1 // pred_region
      %191 = dma.done [#allocation6], 1024
    $region113: #{tpu_custom_call.1} parent=1 // pred_fallthru
      _
    // Predicated region
    $region114: #{tpu_custom_call.1} parent=1 // pred_check
      _
    $region115: #{tpu_custom_call.1} parent=1 // pred_check_branch
      %193 = sbr.rel (0) target = $region117
    $region116: #{tpu_custom_call.1} parent=1 // pred_region
      %194 = dma.done [#allocation9], 16
    $region117: #{tpu_custom_call.1} parent=1 // pred_fallthru
      _
    // Predicated region
    $region118: #{tpu_custom_call.1} parent=1 // pred_check
      _
    $region119: #{tpu_custom_call.1} parent=1 // pred_check_branch
      %196 = sbr.rel (0) target = $region121
    $region120: #{tpu_custom_call.1} parent=1 // pred_region
      %197 = dma.done [#allocation9], 1024
    $region121: #{tpu_custom_call.1} parent=1 // pred_fallthru
      _
    // Predicated region
    $region122: #{tpu_custom_call.1} parent=1 // pred_check
      _
    $region123: #{tpu_custom_call.1} parent=1 // pred_check_branch
      %199 = sbr.rel (0) target = $region125
    $region124: #{tpu_custom_call.1} parent=1 // pred_region
      %200 = dma.done [#allocation12], 1024
    $region125: #{tpu_custom_call.1} parent=1 // pred_fallthru
      _
    // Predicated region
    $region126: #{tpu_custom_call.1} parent=1 // pred_check
      _
    $region127: #{tpu_custom_call.1} parent=1 // pred_check_branch
      %202 = sbr.rel (0) target = $region129
    $region128: #{tpu_custom_call.1} parent=1 // pred_region
      %203 = dma.done [#allocation12], 1024
    $region129: #{tpu_custom_call.1} parent=1 // pred_fallthru
      _
    // Predicated region
    $region130: #{tpu_custom_call.1} parent=1 // pred_check
      _
    $region131: #{tpu_custom_call.1} parent=1 // pred_check_branch
      %205 = sbr.rel (0) target = $region133
    $region132: #{tpu_custom_call.1} parent=1 // pred_region
      %206 = dma.done [#allocation15], 2048
    $region133: #{tpu_custom_call.1} parent=1 // pred_fallthru
      _
    // Predicated region
    $region134: #{tpu_custom_call.1} parent=1 // pred_check
      _
    $region135: #{tpu_custom_call.1} parent=1 // pred_check_branch
      %208 = sbr.rel (0) target = $region137
    $region136: #{tpu_custom_call.1} parent=1 // pred_region
      %209 = dma.done [#allocation15], 2048
    $region137: #{tpu_custom_call.1} parent=1 // pred_fallthru
      _
    // Predicated region
    $region138: #{tpu_custom_call.1} parent=1 // pred_check
      _
    $region139: #{tpu_custom_call.1} parent=1 // pred_check_branch
      %211 = sbr.rel (0) target = $region141
    $region140: #{tpu_custom_call.1} parent=1 // pred_region
      %212 = dma.done [#allocation18], 2048
    $region141: #{tpu_custom_call.1} parent=1 // pred_fallthru
      _
    %v214 = vld [vmem:[%s0] sm:$0xf]
    %v215 = vld [vmem:[#allocation2] sm:$0xf]
    %v216 = vld [vmem:[#allocation2 + $0x4] sm:$0xf]
    %v217 = vld [vmem:[#allocation2 + $0x8] sm:$0xf]
    %v218 = vld [vmem:[#allocation2 + $0xc] sm:$0xf]
    %v219 = vld [vmem:[#allocation2 + $0x10] sm:$0xf]
    %v220 = vld [vmem:[#allocation2 + $0x14] sm:$0xf]
    %v221 = vld [vmem:[#allocation2 + $0x18] sm:$0xf]
    %v222 = vld [vmem:[#allocation2 + $0x1c] sm:$0xf]
    %v223 = vld [vmem:[#allocation2 + $0x20] sm:$0xf]
    %v224 = vld [vmem:[#allocation2 + $0x24] sm:$0xf]
    %v225 = vld [vmem:[#allocation2 + $0x28] sm:$0xf]
    %v226 = vld [vmem:[#allocation2 + $0x2c] sm:$0xf]
    %v227 = vld [vmem:[#allocation2 + $0x30] sm:$0xf]
    %v228 = vld [vmem:[#allocation2 + $0x34] sm:$0xf]
    %v229 = vld [vmem:[#allocation2 + $0x38] sm:$0xf]
    %v230 = vld [vmem:[#allocation2 + $0x3c] sm:$0xf]
    %v231 = vld [vmem:[#allocation5] sm:$0x1]
    %v233 = vlaneseq
    %v234 = vshrl.u32 %v233, 7
    %v235 = vsub.s32 0, %v234
    %v236 = vrot.slane %v231, %v235
    %v254 = vunpack.c.l.b16 %v215
    %v255 = vunpack.c.l.b16 %v216
    %v256 = vunpack.c.l.b16 %v217
    %v257 = vunpack.c.l.b16 %v218
    %v258 = vunpack.c.l.b16 %v219
    %v259 = vunpack.c.l.b16 %v220
    %v260 = vunpack.c.l.b16 %v221
    %v261 = vunpack.c.l.b16 %v222
    %v262 = vunpack.c.l.b16 %v223
    %v263 = vunpack.c.l.b16 %v224
    %v264 = vunpack.c.l.b16 %v225
    %v265 = vunpack.c.l.b16 %v226
    %v266 = vunpack.c.l.b16 %v227
    %v267 = vunpack.c.l.b16 %v228
    %v268 = vunpack.c.l.b16 %v229
    %v269 = vunpack.c.l.b16 %v230
    %v270 = vpack.c.b16 %v255, %v254
    %v271 = vpack.c.b16 %v257, %v256
    %v272 = vpack.c.b16 %v259, %v258
    %v273 = vpack.c.b16 %v261, %v260
    %v274 = vpack.c.b16 %v263, %v262
    %v275 = vpack.c.b16 %v265, %v264
    %v276 = vpack.c.b16 %v267, %v266
    %v277 = vpack.c.b16 %v269, %v268
    %286 = vmatprep.subr.bf16.mxu0 0
    %287 = vmatpush1.bf16.msra.mxu0 %v277
    %288 = vmatprep.subr.bf16.mxu0 0
    %289 = vmatpush1.bf16.msra.mxu0 %v276
    %290 = vmatprep.subr.bf16.mxu0 0
    %291 = vmatpush1.bf16.msra.mxu0 %v275
    %292 = vmatprep.subr.bf16.mxu0 0
    %293 = vmatpush1.bf16.msra.mxu0 %v274
    %294 = vmatprep.subr.bf16.mxu0 0
    %295 = vmatpush1.bf16.msra.mxu0 %v273
    %296 = vmatprep.subr.bf16.mxu0 0
    %297 = vmatpush1.bf16.msra.mxu0 %v272
    %298 = vmatprep.subr.bf16.mxu0 0
    %299 = vmatpush1.bf16.msra.mxu0 %v271
    %300 = vmatprep.subr.bf16.mxu0 0
    %301 = vmatpush1.bf16.msra.mxu0 %v270
    %302 = vmatprep.subr.bf16.mxu0 0
    %303 = vmatpush2.bf16.msra.mxu0 0
    %304 = vmatprep.subr.bf16.mxu0 0
    %305 = vmatpush2.bf16.msra.mxu0 0
    %306 = vmatprep.subr.bf16.mxu0 0
    %307 = vmatpush2.bf16.msra.mxu0 0
    %308 = vmatprep.subr.bf16.mxu0 0
    %309 = vmatpush2.bf16.msra.mxu0 0
    %310 = vmatprep.subr.bf16.mxu0 0
    %311 = vmatpush2.bf16.msra.mxu0 0
    %312 = vmatprep.subr.bf16.mxu0 0
    %313 = vmatpush2.bf16.msra.mxu0 0
    %314 = vmatprep.subr.bf16.mxu0 0
    %315 = vmatpush2.bf16.msra.mxu0 0
    %316 = vmatprep.subr.bf16.mxu0 0
    %317 = vmatpush2.bf16.msra.mxu0 0
    %318 = vmatprep.mubr.bf16.mxu0 0
    %319 = vmatmul.mubr.bf16.gmra.mxu0 %v214
    %v320 = vpop.f32.mrf.mxu0
    %v321 = vadd.f32 %v236, %v320
    %v322 = vpop.f32.mrf.mxu0
    %v323 = vpop.f32.mrf.mxu0
    %v324 = vpop.f32.mrf.mxu0
    %325 = vdwg.mxu0
    %v326 = vld [vmem:[%s1] sm:$0xf]
    %v327 = vld [vmem:[#allocation7] sm:$0xf]
    %v328 = vld [vmem:[#allocation7 + $0x4] sm:$0xf]
    %v329 = vld [vmem:[#allocation7 + $0x8] sm:$0xf]
    %v330 = vld [vmem:[#allocation7 + $0xc] sm:$0xf]
    %v331 = vld [vmem:[#allocation7 + $0x10] sm:$0xf]
    %v332 = vld [vmem:[#allocation7 + $0x14] sm:$0xf]
    %v333 = vld [vmem:[#allocation7 + $0x18] sm:$0xf]
    %v334 = vld [vmem:[#allocation7 + $0x1c] sm:$0xf]
    %v335 = vld [vmem:[#allocation7 + $0x20] sm:$0xf]
    %v336 = vld [vmem:[#allocation7 + $0x24] sm:$0xf]
    %v337 = vld [vmem:[#allocation7 + $0x28] sm:$0xf]
    %v338 = vld [vmem:[#allocation7 + $0x2c] sm:$0xf]
    %v339 = vld [vmem:[#allocation7 + $0x30] sm:$0xf]
    %v340 = vld [vmem:[#allocation7 + $0x34] sm:$0xf]
    %v341 = vld [vmem:[#allocation7 + $0x38] sm:$0xf]
    %v342 = vld [vmem:[#allocation7 + $0x3c] sm:$0xf]
    %v343 = vld [vmem:[#allocation8] sm:$0x1]
    %v345 = vlaneseq
    %v346 = vshrl.u32 %v345, 7
    %v347 = vsub.s32 0, %v346
    %v348 = vrot.slane %v343, %v347
    %v366 = vunpack.c.l.b16 %v327
    %v367 = vunpack.c.l.b16 %v328
    %v368 = vunpack.c.l.b16 %v329
    %v369 = vunpack.c.l.b16 %v330
    %v370 = vunpack.c.l.b16 %v331
    %v371 = vunpack.c.l.b16 %v332
    %v372 = vunpack.c.l.b16 %v333
    %v373 = vunpack.c.l.b16 %v334
    %v374 = vunpack.c.l.b16 %v335
    %v375 = vunpack.c.l.b16 %v336
    %v376 = vunpack.c.l.b16 %v337
    %v377 = vunpack.c.l.b16 %v338
    %v378 = vunpack.c.l.b16 %v339
    %v379 = vunpack.c.l.b16 %v340
    %v380 = vunpack.c.l.b16 %v341
    %v381 = vunpack.c.l.b16 %v342
    %v382 = vpack.c.b16 %v367, %v366
    %v383 = vpack.c.b16 %v369, %v368
    %v384 = vpack.c.b16 %v371, %v370
    %v385 = vpack.c.b16 %v373, %v372
    %v386 = vpack.c.b16 %v375, %v374
    %v387 = vpack.c.b16 %v377, %v376
    %v388 = vpack.c.b16 %v379, %v378
    %v389 = vpack.c.b16 %v381, %v380
    %398 = vmatprep.subr.bf16.mxu0 0
    %399 = vmatpush1.bf16.msra.mxu0 %v389
    %400 = vmatprep.subr.bf16.mxu0 0
    %401 = vmatpush1.bf16.msra.mxu0 %v388
    %402 = vmatprep.subr.bf16.mxu0 0
    %403 = vmatpush1.bf16.msra.mxu0 %v387
    %404 = vmatprep.subr.bf16.mxu0 0
    %405 = vmatpush1.bf16.msra.mxu0 %v386
    %406 = vmatprep.subr.bf16.mxu0 0
    %407 = vmatpush1.bf16.msra.mxu0 %v385
    %408 = vmatprep.subr.bf16.mxu0 0
    %409 = vmatpush1.bf16.msra.mxu0 %v384
    %410 = vmatprep.subr.bf16.mxu0 0
    %411 = vmatpush1.bf16.msra.mxu0 %v383
    %412 = vmatprep.subr.bf16.mxu0 0
    %413 = vmatpush1.bf16.msra.mxu0 %v382
    %414 = vmatprep.subr.bf16.mxu0 0
    %415 = vmatpush2.bf16.msra.mxu0 0
    %416 = vmatprep.subr.bf16.mxu0 0
    %417 = vmatpush2.bf16.msra.mxu0 0
    %418 = vmatprep.subr.bf16.mxu0 0
    %419 = vmatpush2.bf16.msra.mxu0 0
    %420 = vmatprep.subr.bf16.mxu0 0
    %421 = vmatpush2.bf16.msra.mxu0 0
    %422 = vmatprep.subr.bf16.mxu0 0
    %423 = vmatpush2.bf16.msra.mxu0 0
    %424 = vmatprep.subr.bf16.mxu0 0
    %425 = vmatpush2.bf16.msra.mxu0 0
    %426 = vmatprep.subr.bf16.mxu0 0
    %427 = vmatpush2.bf16.msra.mxu0 0
    %428 = vmatprep.subr.bf16.mxu0 0
    %429 = vmatpush2.bf16.msra.mxu0 0
    %430 = vmatprep.mubr.bf16.mxu0 0
    %431 = vmatmul.mubr.bf16.gmra.mxu0 %v326
    %v432 = vpop.f32.mrf.mxu0
    %v433 = vadd.f32 %v348, %v432
    %v434 = vpop.f32.mrf.mxu0
    %v435 = vpop.f32.mrf.mxu0
    %v436 = vpop.f32.mrf.mxu0
    %437 = vdwg.mxu0
    %v438 = vpack.c.bf16 %v321, %v321
    %v439 = vpack.c.bf16 %v433, %v433
    %v440 = vld [vmem:[#allocation10] sm:$0xf]
    %v441 = vld [vmem:[#allocation10 + $0x4] sm:$0xf]
    %v442 = vld [vmem:[#allocation10 + $0x8] sm:$0xf]
    %v443 = vld [vmem:[#allocation10 + $0xc] sm:$0xf]
    %v444 = vld [vmem:[#allocation10 + $0x10] sm:$0xf]
    %v445 = vld [vmem:[#allocation10 + $0x14] sm:$0xf]
    %v446 = vld [vmem:[#allocation10 + $0x18] sm:$0xf]
    %v447 = vld [vmem:[#allocation10 + $0x1c] sm:$0xf]
    %v448 = vld [vmem:[#allocation10 + $0x20] sm:$0xf]
    %v449 = vld [vmem:[#allocation10 + $0x24] sm:$0xf]
    %v450 = vld [vmem:[#allocation10 + $0x28] sm:$0xf]
    %v451 = vld [vmem:[#allocation10 + $0x2c] sm:$0xf]
    %v452 = vld [vmem:[#allocation10 + $0x30] sm:$0xf]
    %v453 = vld [vmem:[#allocation10 + $0x34] sm:$0xf]
    %v454 = vld [vmem:[#allocation10 + $0x38] sm:$0xf]
    %v455 = vld [vmem:[#allocation10 + $0x3c] sm:$0xf]
    %v472 = vunpack.c.l.b16 %v440
    %v473 = vunpack.c.l.b16 %v441
    %v474 = vunpack.c.l.b16 %v442
    %v475 = vunpack.c.l.b16 %v443
    %v476 = vunpack.c.l.b16 %v444
    %v477 = vunpack.c.l.b16 %v445
    %v478 = vunpack.c.l.b16 %v446
    %v479 = vunpack.c.l.b16 %v447
    %v480 = vunpack.c.l.b16 %v448
    %v481 = vunpack.c.l.b16 %v449
    %v482 = vunpack.c.l.b16 %v450
    %v483 = vunpack.c.l.b16 %v451
    %v484 = vunpack.c.l.b16 %v452
    %v485 = vunpack.c.l.b16 %v453
    %v486 = vunpack.c.l.b16 %v454
    %v487 = vunpack.c.l.b16 %v455
    %v488 = vpack.c.b16 %v473, %v472
    %v489 = vpack.c.b16 %v475, %v474
    %v490 = vpack.c.b16 %v477, %v476
    %v491 = vpack.c.b16 %v479, %v478
    %v492 = vpack.c.b16 %v481, %v480
    %v493 = vpack.c.b16 %v483, %v482
    %v494 = vpack.c.b16 %v485, %v484
    %v495 = vpack.c.b16 %v487, %v486
    %504 = vmatprep.subr.bf16.mxu0 0
    %505 = vmatpush1.bf16.msra.mxu0 %v495
    %506 = vmatprep.subr.bf16.mxu0 0
    %507 = vmatpush1.bf16.msra.mxu0 %v494
    %508 = vmatprep.subr.bf16.mxu0 0
    %509 = vmatpush1.bf16.msra.mxu0 %v493
    %510 = vmatprep.subr.bf16.mxu0 0
    %511 = vmatpush1.bf16.msra.mxu0 %v492
    %512 = vmatprep.subr.bf16.mxu0 0
    %513 = vmatpush1.bf16.msra.mxu0 %v491
    %514 = vmatprep.subr.bf16.mxu0 0
    %515 = vmatpush1.bf16.msra.mxu0 %v490
    %516 = vmatprep.subr.bf16.mxu0 0
    %517 = vmatpush1.bf16.msra.mxu0 %v489
    %518 = vmatprep.subr.bf16.mxu0 0
    %519 = vmatpush1.bf16.msra.mxu0 %v488
    %520 = vmatprep.subr.bf16.mxu0 0
    %521 = vmatpush2.bf16.msra.mxu0 0
    %522 = vmatprep.subr.bf16.mxu0 0
    %523 = vmatpush2.bf16.msra.mxu0 0
    %524 = vmatprep.subr.bf16.mxu0 0
    %525 = vmatpush2.bf16.msra.mxu0 0
    %526 = vmatprep.subr.bf16.mxu0 0
    %527 = vmatpush2.bf16.msra.mxu0 0
    %528 = vmatprep.subr.bf16.mxu0 0
    %529 = vmatpush2.bf16.msra.mxu0 0
    %530 = vmatprep.subr.bf16.mxu0 0
    %531 = vmatpush2.bf16.msra.mxu0 0
    %532 = vmatprep.subr.bf16.mxu0 0
    %533 = vmatpush2.bf16.msra.mxu0 0
    %534 = vmatprep.subr.bf16.mxu0 0
    %535 = vmatpush2.bf16.msra.mxu0 0
    %536 = vmatprep.mubr.bf16.mxu0 0
    %537 = vmatmul.mubr.bf16.gmra.mxu0 %v438
    %v538 = vpop.f32.mrf.mxu0
    %v539 = vadd.f32 0.0, %v538
    %v540 = vpop.f32.mrf.mxu0
    %v541 = vpop.f32.mrf.mxu0
    %v542 = vpop.f32.mrf.mxu0
    %543 = vdwg.mxu0
    %v544 = vld [vmem:[#allocation11] sm:$0xf]
    %v545 = vld [vmem:[#allocation11 + $0x4] sm:$0xf]
    %v546 = vld [vmem:[#allocation11 + $0x8] sm:$0xf]
    %v547 = vld [vmem:[#allocation11 + $0xc] sm:$0xf]
    %v548 = vld [vmem:[#allocation11 + $0x10] sm:$0xf]
    %v549 = vld [vmem:[#allocation11 + $0x14] sm:$0xf]
    %v550 = vld [vmem:[#allocation11 + $0x18] sm:$0xf]
    %v551 = vld [vmem:[#allocation11 + $0x1c] sm:$0xf]
    %v552 = vld [vmem:[#allocation11 + $0x20] sm:$0xf]
    %v553 = vld [vmem:[#allocation11 + $0x24] sm:$0xf]
    %v554 = vld [vmem:[#allocation11 + $0x28] sm:$0xf]
    %v555 = vld [vmem:[#allocation11 + $0x2c] sm:$0xf]
    %v556 = vld [vmem:[#allocation11 + $0x30] sm:$0xf]
    %v557 = vld [vmem:[#allocation11 + $0x34] sm:$0xf]
    %v558 = vld [vmem:[#allocation11 + $0x38] sm:$0xf]
    %v559 = vld [vmem:[#allocation11 + $0x3c] sm:$0xf]
    %v576 = vunpack.c.l.b16 %v544
    %v577 = vunpack.c.l.b16 %v545
    %v578 = vunpack.c.l.b16 %v546
    %v579 = vunpack.c.l.b16 %v547
    %v580 = vunpack.c.l.b16 %v548
    %v581 = vunpack.c.l.b16 %v549
    %v582 = vunpack.c.l.b16 %v550
    %v583 = vunpack.c.l.b16 %v551
    %v584 = vunpack.c.l.b16 %v552
    %v585 = vunpack.c.l.b16 %v553
    %v586 = vunpack.c.l.b16 %v554
    %v587 = vunpack.c.l.b16 %v555
    %v588 = vunpack.c.l.b16 %v556
    %v589 = vunpack.c.l.b16 %v557
    %v590 = vunpack.c.l.b16 %v558
    %v591 = vunpack.c.l.b16 %v559
    %v592 = vpack.c.b16 %v577, %v576
    %v593 = vpack.c.b16 %v579, %v578
    %v594 = vpack.c.b16 %v581, %v580
    %v595 = vpack.c.b16 %v583, %v582
    %v596 = vpack.c.b16 %v585, %v584
    %v597 = vpack.c.b16 %v587, %v586
    %v598 = vpack.c.b16 %v589, %v588
    %v599 = vpack.c.b16 %v591, %v590
    %608 = vmatprep.subr.bf16.mxu0 0
    %609 = vmatpush1.bf16.msra.mxu0 %v599
    %610 = vmatprep.subr.bf16.mxu0 0
    %611 = vmatpush1.bf16.msra.mxu0 %v598
    %612 = vmatprep.subr.bf16.mxu0 0
    %613 = vmatpush1.bf16.msra.mxu0 %v597
    %614 = vmatprep.subr.bf16.mxu0 0
    %615 = vmatpush1.bf16.msra.mxu0 %v596
    %616 = vmatprep.subr.bf16.mxu0 0
    %617 = vmatpush1.bf16.msra.mxu0 %v595
    %618 = vmatprep.subr.bf16.mxu0 0
    %619 = vmatpush1.bf16.msra.mxu0 %v594
    %620 = vmatprep.subr.bf16.mxu0 0
    %621 = vmatpush1.bf16.msra.mxu0 %v593
    %622 = vmatprep.subr.bf16.mxu0 0
    %623 = vmatpush1.bf16.msra.mxu0 %v592
    %624 = vmatprep.subr.bf16.mxu0 0
    %625 = vmatpush2.bf16.msra.mxu0 0
    %626 = vmatprep.subr.bf16.mxu0 0
    %627 = vmatpush2.bf16.msra.mxu0 0
    %628 = vmatprep.subr.bf16.mxu0 0
    %629 = vmatpush2.bf16.msra.mxu0 0
    %630 = vmatprep.subr.bf16.mxu0 0
    %631 = vmatpush2.bf16.msra.mxu0 0
    %632 = vmatprep.subr.bf16.mxu0 0
    %633 = vmatpush2.bf16.msra.mxu0 0
    %634 = vmatprep.subr.bf16.mxu0 0
    %635 = vmatpush2.bf16.msra.mxu0 0
    %636 = vmatprep.subr.bf16.mxu0 0
    %637 = vmatpush2.bf16.msra.mxu0 0
    %638 = vmatprep.subr.bf16.mxu0 0
    %639 = vmatpush2.bf16.msra.mxu0 0
    %640 = vmatprep.mubr.bf16.mxu0 0
    %641 = vmatmul.mubr.bf16.gmra.mxu0 %v439
    %v642 = vpop.f32.mrf.mxu0
    %v643 = vadd.f32 0.0, %v642
    %v644 = vpop.f32.mrf.mxu0
    %v645 = vpop.f32.mrf.mxu0
    %v646 = vpop.f32.mrf.mxu0
    %647 = vdwg.mxu0
    %648 = vxpose.xlu0.b32.start [1/16] %v539, 128
    %649 = vxpose.xlu0.b32.cont [2/16] 0.0, 128
    %650 = vxpose.xlu0.b32.cont [3/16] 0.0, 128
    %651 = vxpose.xlu0.b32.cont [4/16] 0.0, 128
    %652 = vxpose.xlu0.b32.cont [5/16] 0.0, 128
    %653 = vxpose.xlu0.b32.cont [6/16] 0.0, 128
    %654 = vxpose.xlu0.b32.cont [7/16] 0.0, 128
    %655 = vxpose.xlu0.b32.cont [8/16] 0.0, 128
    %656 = vxpose.xlu0.b32.cont [9/16] 0.0, 128
    %657 = vxpose.xlu0.b32.cont [10/16] 0.0, 128
    %658 = vxpose.xlu0.b32.cont [11/16] 0.0, 128
    %659 = vxpose.xlu0.b32.cont [12/16] 0.0, 128
    %660 = vxpose.xlu0.b32.cont [13/16] 0.0, 128
    %661 = vxpose.xlu0.b32.cont [14/16] 0.0, 128
    %662 = vxpose.xlu0.b32.cont [15/16] 0.0, 128
    %663 = vxpose.xlu0.b32.end [16/16] 0.0, 128
    %v664 = vpop.trf.xlu0
    %v665 = vpop.trf.xlu0
    %v666 = vpop.trf.xlu0
    %v667 = vpop.trf.xlu0
    %v668 = vpop.trf.xlu0
    %v669 = vpop.trf.xlu0
    %v670 = vpop.trf.xlu0
    %v671 = vpop.trf.xlu0
    %v672 = vpop.trf.xlu0
    %v673 = vpop.trf.xlu0
    %v674 = vpop.trf.xlu0
    %v675 = vpop.trf.xlu0
    %v676 = vpop.trf.xlu0
    %v677 = vpop.trf.xlu0
    %v678 = vpop.trf.xlu0
    %v679 = vpop.trf.xlu0
    %680 = vxpose.xlu0.b32.start [1/16] %v643, 128
    %681 = vxpose.xlu0.b32.cont [2/16] 0.0, 128
    %682 = vxpose.xlu0.b32.cont [3/16] 0.0, 128
    %683 = vxpose.xlu0.b32.cont [4/16] 0.0, 128
    %684 = vxpose.xlu0.b32.cont [5/16] 0.0, 128
    %685 = vxpose.xlu0.b32.cont [6/16] 0.0, 128
    %686 = vxpose.xlu0.b32.cont [7/16] 0.0, 128
    %687 = vxpose.xlu0.b32.cont [8/16] 0.0, 128
    %688 = vxpose.xlu0.b32.cont [9/16] 0.0, 128
    %689 = vxpose.xlu0.b32.cont [10/16] 0.0, 128
    %690 = vxpose.xlu0.b32.cont [11/16] 0.0, 128
    %691 = vxpose.xlu0.b32.cont [12/16] 0.0, 128
    %692 = vxpose.xlu0.b32.cont [13/16] 0.0, 128
    %693 = vxpose.xlu0.b32.cont [14/16] 0.0, 128
    %694 = vxpose.xlu0.b32.cont [15/16] 0.0, 128
    %695 = vxpose.xlu0.b32.end [16/16] 0.0, 128
    %v696 = vpop.trf.xlu0
    %v697 = vpop.trf.xlu0
    %v698 = vpop.trf.xlu0
    %v699 = vpop.trf.xlu0
    %v700 = vpop.trf.xlu0
    %v701 = vpop.trf.xlu0
    %v702 = vpop.trf.xlu0
    %v703 = vpop.trf.xlu0
    %v704 = vpop.trf.xlu0
    %v705 = vpop.trf.xlu0
    %v706 = vpop.trf.xlu0
    %v707 = vpop.trf.xlu0
    %v708 = vpop.trf.xlu0
    %v709 = vpop.trf.xlu0
    %v710 = vpop.trf.xlu0
    %v711 = vpop.trf.xlu0
    %v712 = vld [vmem:[%s8] sm:$0xf]
    %v713 = vld [vmem:[%s13] sm:$0xff]
    %715 = vset.pattern.permute.xlu0 3
    %716 = vperm.xlu0 %715, %v643
    %v717 = vpop.permute.xlu0 %716
    %v719 = vlaneseq
    %v720 = vshrl.u32 %v719, 7
    %v721 = vsub.s32 0, %v720
    %v722 = vrot.slane %v664, %v721
    %v723 = vadd.f32 %v717, %v722
    %v724 = vmul.f32 %v723, 0.2
    %v725 = vmax.f32 %v723, %v724
    %v726 = vunpack.c.l.bf16 %v712
    %v727 = vadd.f32 %v725, %v726
    %vm728 = vcmask 64512
    %v729 = vsel %vm728, %v727, -inf
    %730 = vmax.xlane.f32.xlu0 %v729
    %v731 = vpop.xlane.xlu0 %730
    %v732 = vsub.f32 %v727, %v731
    %v733 = vmul.f32 %v732, 1.442695
    %v734 = vpow.pop %v733
    %v735 = vsel %vm728, %v734, 0.0
    %736 = vadd.xlane.f32.xlu0 %v735
    %v737 = vpop.xlane.xlu0 %736
    %v738 = vpack.c.bf16 %v734, %v734
    %v740 = vsel %vm728, %v738, 0
    %vm742 = vcmask 1043456
    %v744 = vsel %vm742, %v438, 0
    %746 = vmatprep.subr.bf16.mxu0 0
    %747 = vmatpush1.bf16.msra.mxu0 0
    %748 = vmatprep.subr.bf16.mxu0 0
    %749 = vmatpush1.bf16.msra.mxu0 0
    %750 = vmatprep.subr.bf16.mxu0 0
    %751 = vmatpush1.bf16.msra.mxu0 0
    %752 = vmatprep.subr.bf16.mxu0 0
    %753 = vmatpush1.bf16.msra.mxu0 0
    %754 = vmatprep.subr.bf16.mxu0 0
    %755 = vmatpush1.bf16.msra.mxu0 0
    %756 = vmatprep.subr.bf16.mxu0 0
    %757 = vmatpush1.bf16.msra.mxu0 0
    %758 = vmatprep.subr.bf16.mxu0 0
    %759 = vmatpush1.bf16.msra.mxu0 0
    %760 = vmatprep.subr.bf16.mxu0 0
    %761 = vmatpush1.bf16.msra.mxu0 %v744
    %762 = vmatprep.subr.bf16.mxu0 0
    %763 = vmatpush2.bf16.msra.mxu0 0
    %764 = vmatprep.subr.bf16.mxu0 0
    %765 = vmatpush2.bf16.msra.mxu0 0
    %766 = vmatprep.subr.bf16.mxu0 0
    %767 = vmatpush2.bf16.msra.mxu0 0
    %768 = vmatprep.subr.bf16.mxu0 0
    %769 = vmatpush2.bf16.msra.mxu0 0
    %770 = vmatprep.subr.bf16.mxu0 0
    %771 = vmatpush2.bf16.msra.mxu0 0
    %772 = vmatprep.subr.bf16.mxu0 0
    %773 = vmatpush2.bf16.msra.mxu0 0
    %774 = vmatprep.subr.bf16.mxu0 0
    %775 = vmatpush2.bf16.msra.mxu0 0
    %776 = vmatprep.subr.bf16.mxu0 0
    %777 = vmatpush2.bf16.msra.mxu0 0
    %778 = vmatprep.mubr.bf16.mxu0 0
    %779 = vmatmul.mubr.bf16.gmra.mxu0 %v740
    %v780 = vpop.f32.mrf.mxu0
    %v781 = vadd.f32 0.0, %v780
    %v782 = vpop.f32.mrf.mxu0
    %v783 = vpop.f32.mrf.mxu0
    %v784 = vpop.f32.mrf.mxu0
    %785 = vdwg.mxu0
    %v786 = vrcp.pop %v737
    %v787 = vmul.f32 %v786, %v713
    %789 = vset.pattern.permute.xlu0 0
    %790 = vperm.xlu0 %789, %v787
    %v791 = vpop.permute.xlu0 %790
    %v793 = vmul.f32 %v781, %v791
    %v794 = vmax.f32 %v793, 0.0
    %v795 = vld [vmem:[%s9] sm:$0xf]
    %796 = vset.pattern.permute.xlu0 4
    %797 = vperm.xlu0 %796, %v643
    %v798 = vpop.permute.xlu0 %797
    %v800 = vlaneseq
    %v801 = vshrl.u32 %v800, 7
    %v802 = vsub.s32 1, %v801
    %v803 = vrot.slane %v664, %v802
    %v804 = vadd.f32 %v798, %v803
    %v805 = vmul.f32 %v804, 0.2
    %v806 = vmax.f32 %v804, %v805
    %v807 = vunpack.c.l.bf16 %v795
    %v808 = vadd.f32 %v806, %v807
    %v809 = vsel %vm728, %v808, -inf
    %810 = vmax.xlane.f32.xlu0 %v809
    %v811 = vpop.xlane.xlu0 %810
    %v812 = vsub.f32 %v808, %v811
    %v813 = vmul.f32 %v812, 1.442695
    %v814 = vpow.pop %v813
    %v815 = vsel %vm728, %v814, 0.0
    %816 = vadd.xlane.f32.xlu0 %v815
    %v817 = vpop.xlane.xlu0 %816
    %v818 = vpack.c.bf16 %v814, %v814
    %v820 = vsel %vm728, %v818, 0
    %822 = vmatprep.subr.bf16.mxu0 0
    %823 = vmatpush1.bf16.msra.mxu0 0
    %824 = vmatprep.subr.bf16.mxu0 0
    %825 = vmatpush1.bf16.msra.mxu0 0
    %826 = vmatprep.subr.bf16.mxu0 0
    %827 = vmatpush1.bf16.msra.mxu0 0
    %828 = vmatprep.subr.bf16.mxu0 0
    %829 = vmatpush1.bf16.msra.mxu0 0
    %830 = vmatprep.subr.bf16.mxu0 0
    %831 = vmatpush1.bf16.msra.mxu0 0
    %832 = vmatprep.subr.bf16.mxu0 0
    %833 = vmatpush1.bf16.msra.mxu0 0
    %834 = vmatprep.subr.bf16.mxu0 0
    %835 = vmatpush1.bf16.msra.mxu0 0
    %836 = vmatprep.subr.bf16.mxu0 0
    %837 = vmatpush1.bf16.msra.mxu0 %v744
    %838 = vmatprep.subr.bf16.mxu0 0
    %839 = vmatpush2.bf16.msra.mxu0 0
    %840 = vmatprep.subr.bf16.mxu0 0
    %841 = vmatpush2.bf16.msra.mxu0 0
    %842 = vmatprep.subr.bf16.mxu0 0
    %843 = vmatpush2.bf16.msra.mxu0 0
    %844 = vmatprep.subr.bf16.mxu0 0
    %845 = vmatpush2.bf16.msra.mxu0 0
    %846 = vmatprep.subr.bf16.mxu0 0
    %847 = vmatpush2.bf16.msra.mxu0 0
    %848 = vmatprep.subr.bf16.mxu0 0
    %849 = vmatpush2.bf16.msra.mxu0 0
    %850 = vmatprep.subr.bf16.mxu0 0
    %851 = vmatpush2.bf16.msra.mxu0 0
    %852 = vmatprep.subr.bf16.mxu0 0
    %853 = vmatpush2.bf16.msra.mxu0 0
    %854 = vmatprep.mubr.bf16.mxu0 0
    %855 = vmatmul.mubr.bf16.gmra.mxu0 %v820
    %v856 = vpop.f32.mrf.mxu0
    %v857 = vadd.f32 0.0, %v856
    %v858 = vpop.f32.mrf.mxu0
    %v859 = vpop.f32.mrf.mxu0
    %v860 = vpop.f32.mrf.mxu0
    %861 = vdwg.mxu0
    %v862 = vrcp.pop %v817
    %v863 = vmul.f32 %v862, %v713
    %865 = vset.pattern.permute.xlu0 1
    %866 = vperm.xlu0 %865, %v863
    %v867 = vpop.permute.xlu0 %866
    %v869 = vmul.f32 %v857, %v867
    %v870 = vmax.f32 %v869, 0.0
    %v871 = vld [vmem:[%s10] sm:$0xf]
    %v872 = vld [vmem:[%s14] sm:$0xff]
    %874 = vset.pattern.permute.xlu0 2
    %875 = vperm.xlu0 %874, %v539
    %v876 = vpop.permute.xlu0 %875
    %v878 = vlaneseq
    %v879 = vshrl.u32 %v878, 7
    %v880 = vsub.s32 0, %v879
    %v881 = vrot.slane %v696, %v880
    %v882 = vadd.f32 %v876, %v881
    %v883 = vmul.f32 %v882, 0.2
    %v884 = vmax.f32 %v882, %v883
    %v885 = vunpack.c.l.bf16 %v871
    %v886 = vadd.f32 %v884, %v885
    %v887 = vsel %vm728, %v886, -inf
    %888 = vmax.xlane.f32.xlu0 %v887
    %v889 = vpop.xlane.xlu0 %888
    %v890 = vsub.f32 %v886, %v889
    %v891 = vmul.f32 %v890, 1.442695
    %v892 = vpow.pop %v891
    %v893 = vsel %vm728, %v892, 0.0
    %894 = vadd.xlane.f32.xlu0 %v893
    %v895 = vpop.xlane.xlu0 %894
    %v896 = vpack.c.bf16 %v892, %v892
    %v898 = vsel %vm728, %v896, 0
    %v901 = vsel %vm742, %v439, 0
    %903 = vmatprep.subr.bf16.mxu0 0
    %904 = vmatpush1.bf16.msra.mxu0 0
    %905 = vmatprep.subr.bf16.mxu0 0
    %906 = vmatpush1.bf16.msra.mxu0 0
    %907 = vmatprep.subr.bf16.mxu0 0
    %908 = vmatpush1.bf16.msra.mxu0 0
    %909 = vmatprep.subr.bf16.mxu0 0
    %910 = vmatpush1.bf16.msra.mxu0 0
    %911 = vmatprep.subr.bf16.mxu0 0
    %912 = vmatpush1.bf16.msra.mxu0 0
    %913 = vmatprep.subr.bf16.mxu0 0
    %914 = vmatpush1.bf16.msra.mxu0 0
    %915 = vmatprep.subr.bf16.mxu0 0
    %916 = vmatpush1.bf16.msra.mxu0 0
    %917 = vmatprep.subr.bf16.mxu0 0
    %918 = vmatpush1.bf16.msra.mxu0 %v901
    %919 = vmatprep.subr.bf16.mxu0 0
    %920 = vmatpush2.bf16.msra.mxu0 0
    %921 = vmatprep.subr.bf16.mxu0 0
    %922 = vmatpush2.bf16.msra.mxu0 0
    %923 = vmatprep.subr.bf16.mxu0 0
    %924 = vmatpush2.bf16.msra.mxu0 0
    %925 = vmatprep.subr.bf16.mxu0 0
    %926 = vmatpush2.bf16.msra.mxu0 0
    %927 = vmatprep.subr.bf16.mxu0 0
    %928 = vmatpush2.bf16.msra.mxu0 0
    %929 = vmatprep.subr.bf16.mxu0 0
    %930 = vmatpush2.bf16.msra.mxu0 0
    %931 = vmatprep.subr.bf16.mxu0 0
    %932 = vmatpush2.bf16.msra.mxu0 0
    %933 = vmatprep.subr.bf16.mxu0 0
    %934 = vmatpush2.bf16.msra.mxu0 0
    %935 = vmatprep.mubr.bf16.mxu0 0
    %936 = vmatmul.mubr.bf16.gmra.mxu0 %v898
    %v937 = vpop.f32.mrf.mxu0
    %v938 = vadd.f32 0.0, %v937
    %v939 = vpop.f32.mrf.mxu0
    %v940 = vpop.f32.mrf.mxu0
    %v941 = vpop.f32.mrf.mxu0
    %942 = vdwg.mxu0
    %v943 = vrcp.pop %v895
    %v944 = vmul.f32 %v943, %v872
    %946 = vset.pattern.permute.xlu0 0
    %947 = vperm.xlu0 %946, %v944
    %v948 = vpop.permute.xlu0 %947
    %v950 = vmul.f32 %v938, %v948
    %v951 = vmax.f32 %v950, 0.0
    %v952 = vld [vmem:[%s11] sm:$0xf]
    %953 = vset.pattern.permute.xlu0 5
    %954 = vperm.xlu0 %953, %v643
    %v955 = vpop.permute.xlu0 %954
    %v957 = vlaneseq
    %v958 = vshrl.u32 %v957, 7
    %v959 = vsub.s32 1, %v958
    %v960 = vrot.slane %v696, %v959
    %v961 = vadd.f32 %v955, %v960
    %v962 = vmul.f32 %v961, 0.2
    %v963 = vmax.f32 %v961, %v962
    %v964 = vunpack.c.l.bf16 %v952
    %v965 = vadd.f32 %v963, %v964
    %v966 = vsel %vm728, %v965, -inf
    %967 = vmax.xlane.f32.xlu0 %v966
    %v968 = vpop.xlane.xlu0 %967
    %v969 = vsub.f32 %v965, %v968
    %v970 = vmul.f32 %v969, 1.442695
    %v971 = vpow.pop %v970
    %v972 = vsel %vm728, %v971, 0.0
    %973 = vadd.xlane.f32.xlu0 %v972
    %v974 = vpop.xlane.xlu0 %973
    %v975 = vpack.c.bf16 %v971, %v971
    %v977 = vsel %vm728, %v975, 0
    %979 = vmatprep.subr.bf16.mxu0 0
    %980 = vmatpush1.bf16.msra.mxu0 0
    %981 = vmatprep.subr.bf16.mxu0 0
    %982 = vmatpush1.bf16.msra.mxu0 0
    %983 = vmatprep.subr.bf16.mxu0 0
    %984 = vmatpush1.bf16.msra.mxu0 0
    %985 = vmatprep.subr.bf16.mxu0 0
    %986 = vmatpush1.bf16.msra.mxu0 0
    %987 = vmatprep.subr.bf16.mxu0 0
    %988 = vmatpush1.bf16.msra.mxu0 0
    %989 = vmatprep.subr.bf16.mxu0 0
    %990 = vmatpush1.bf16.msra.mxu0 0
    %991 = vmatprep.subr.bf16.mxu0 0
    %992 = vmatpush1.bf16.msra.mxu0 0
    %993 = vmatprep.subr.bf16.mxu0 0
    %994 = vmatpush1.bf16.msra.mxu0 %v901
    %995 = vmatprep.subr.bf16.mxu0 0
    %996 = vmatpush2.bf16.msra.mxu0 0
    %997 = vmatprep.subr.bf16.mxu0 0
    %998 = vmatpush2.bf16.msra.mxu0 0
    %999 = vmatprep.subr.bf16.mxu0 0
    %1000 = vmatpush2.bf16.msra.mxu0 0
    %1001 = vmatprep.subr.bf16.mxu0 0
    %1002 = vmatpush2.bf16.msra.mxu0 0
    %1003 = vmatprep.subr.bf16.mxu0 0
    %1004 = vmatpush2.bf16.msra.mxu0 0
    %1005 = vmatprep.subr.bf16.mxu0 0
    %1006 = vmatpush2.bf16.msra.mxu0 0
    %1007 = vmatprep.subr.bf16.mxu0 0
    %1008 = vmatpush2.bf16.msra.mxu0 0
    %1009 = vmatprep.subr.bf16.mxu0 0
    %1010 = vmatpush2.bf16.msra.mxu0 0
    %1011 = vmatprep.mubr.bf16.mxu0 0
    %1012 = vmatmul.mubr.bf16.gmra.mxu0 %v977
    %v1013 = vpop.f32.mrf.mxu0
    %v1014 = vadd.f32 0.0, %v1013
    %v1015 = vpop.f32.mrf.mxu0
    %v1016 = vpop.f32.mrf.mxu0
    %v1017 = vpop.f32.mrf.mxu0
    %1018 = vdwg.mxu0
    %v1019 = vrcp.pop %v974
    %v1020 = vmul.f32 %v1019, %v713
    %1022 = vset.pattern.permute.xlu0 2
    %1023 = vperm.xlu0 %1022, %v1020
    %v1024 = vpop.permute.xlu0 %1023
    %v1026 = vmul.f32 %v1014, %v1024
    %v1027 = vmax.f32 %v1026, 0.0
    %v1028 = vld [vmem:[%s12] sm:$0xf]
    %1029 = vset.pattern.permute.xlu0 6
    %1030 = vperm.xlu0 %1029, %v643
    %v1031 = vpop.permute.xlu0 %1030
    %v1033 = vlaneseq
    %v1034 = vshrl.u32 %v1033, 7
    %v1035 = vsub.s32 2, %v1034
    %v1036 = vrot.slane %v696, %v1035
    %v1037 = vadd.f32 %v1031, %v1036
    %v1038 = vmul.f32 %v1037, 0.2
    %v1039 = vmax.f32 %v1037, %v1038
    %v1040 = vunpack.c.l.bf16 %v1028
    %v1041 = vadd.f32 %v1039, %v1040
    %v1042 = vsel %vm728, %v1041, -inf
    %1043 = vmax.xlane.f32.xlu0 %v1042
    %v1044 = vpop.xlane.xlu0 %1043
    %v1045 = vsub.f32 %v1041, %v1044
    %v1046 = vmul.f32 %v1045, 1.442695
    %v1047 = vpow.pop %v1046
    %v1048 = vsel %vm728, %v1047, 0.0
    %1049 = vadd.xlane.f32.xlu0 %v1048
    %v1050 = vpop.xlane.xlu0 %1049
    %v1051 = vpack.c.bf16 %v1047, %v1047
    %v1053 = vsel %vm728, %v1051, 0
    %1055 = vmatprep.subr.bf16.mxu0 0
    %1056 = vmatpush1.bf16.msra.mxu0 0
    %1057 = vmatprep.subr.bf16.mxu0 0
    %1058 = vmatpush1.bf16.msra.mxu0 0
    %1059 = vmatprep.subr.bf16.mxu0 0
    %1060 = vmatpush1.bf16.msra.mxu0 0
    %1061 = vmatprep.subr.bf16.mxu0 0
    %1062 = vmatpush1.bf16.msra.mxu0 0
    %1063 = vmatprep.subr.bf16.mxu0 0
    %1064 = vmatpush1.bf16.msra.mxu0 0
    %1065 = vmatprep.subr.bf16.mxu0 0
    %1066 = vmatpush1.bf16.msra.mxu0 0
    %1067 = vmatprep.subr.bf16.mxu0 0
    %1068 = vmatpush1.bf16.msra.mxu0 0
    %1069 = vmatprep.subr.bf16.mxu0 0
    %1070 = vmatpush1.bf16.msra.mxu0 %v901
    %1071 = vmatprep.subr.bf16.mxu0 0
    %1072 = vmatpush2.bf16.msra.mxu0 0
    %1073 = vmatprep.subr.bf16.mxu0 0
    %1074 = vmatpush2.bf16.msra.mxu0 0
    %1075 = vmatprep.subr.bf16.mxu0 0
    %1076 = vmatpush2.bf16.msra.mxu0 0
    %1077 = vmatprep.subr.bf16.mxu0 0
    %1078 = vmatpush2.bf16.msra.mxu0 0
    %1079 = vmatprep.subr.bf16.mxu0 0
    %1080 = vmatpush2.bf16.msra.mxu0 0
    %1081 = vmatprep.subr.bf16.mxu0 0
    %1082 = vmatpush2.bf16.msra.mxu0 0
    %1083 = vmatprep.subr.bf16.mxu0 0
    %1084 = vmatpush2.bf16.msra.mxu0 0
    %1085 = vmatprep.subr.bf16.mxu0 0
    %1086 = vmatpush2.bf16.msra.mxu0 0
    %1087 = vmatprep.mubr.bf16.mxu0 0
    %1088 = vmatmul.mubr.bf16.gmra.mxu0 %v1053
    %v1089 = vpop.f32.mrf.mxu0
    %v1090 = vadd.f32 0.0, %v1089
    %v1091 = vpop.f32.mrf.mxu0
    %v1092 = vpop.f32.mrf.mxu0
    %v1093 = vpop.f32.mrf.mxu0
    %1094 = vdwg.mxu0
    %v1095 = vrcp.pop %v1050
    %v1096 = vmul.f32 %v1095, %v713
    %1098 = vset.pattern.permute.xlu0 3
    %1099 = vperm.xlu0 %1098, %v1096
    %v1100 = vpop.permute.xlu0 %1099
    %v1102 = vmul.f32 %v1090, %v1100
    %v1103 = vmax.f32 %v1102, 0.0
    %v1104 = vpack.c.bf16 %v870, %v794
    %v1105 = vpack.c.bf16 %v1103, %v1027
    %v1106 = vld [vmem:[#allocation13] sm:$0xf]
    %v1107 = vld [vmem:[#allocation13 + $0x4] sm:$0xf]
    %v1108 = vld [vmem:[#allocation13 + $0x8] sm:$0xf]
    %v1109 = vld [vmem:[#allocation13 + $0xc] sm:$0xf]
    %v1110 = vld [vmem:[#allocation13 + $0x10] sm:$0xf]
    %v1111 = vld [vmem:[#allocation13 + $0x14] sm:$0xf]
    %v1112 = vld [vmem:[#allocation13 + $0x18] sm:$0xf]
    %v1113 = vld [vmem:[#allocation13 + $0x1c] sm:$0xf]
    %v1114 = vld [vmem:[#allocation13 + $0x20] sm:$0xf]
    %v1115 = vld [vmem:[#allocation13 + $0x24] sm:$0xf]
    %v1116 = vld [vmem:[#allocation13 + $0x28] sm:$0xf]
    %v1117 = vld [vmem:[#allocation13 + $0x2c] sm:$0xf]
    %v1118 = vld [vmem:[#allocation13 + $0x30] sm:$0xf]
    %v1119 = vld [vmem:[#allocation13 + $0x34] sm:$0xf]
    %v1120 = vld [vmem:[#allocation13 + $0x38] sm:$0xf]
    %v1121 = vld [vmem:[#allocation13 + $0x3c] sm:$0xf]
    %v1122 = vld [vmem:[%s19] sm:$0x1]
    %v1124 = vlaneseq
    %v1125 = vshrl.u32 %v1124, 7
    %v1126 = vsub.s32 0, %v1125
    %v1127 = vrot.slane %v1122, %v1126
    %v1145 = vunpack.c.l.b16 %v1106
    %v1146 = vunpack.c.l.b16 %v1107
    %v1147 = vunpack.c.l.b16 %v1108
    %v1148 = vunpack.c.l.b16 %v1109
    %v1149 = vunpack.c.l.b16 %v1110
    %v1150 = vunpack.c.l.b16 %v1111
    %v1151 = vunpack.c.l.b16 %v1112
    %v1152 = vunpack.c.l.b16 %v1113
    %v1153 = vunpack.c.l.b16 %v1114
    %v1154 = vunpack.c.l.b16 %v1115
    %v1155 = vunpack.c.l.b16 %v1116
    %v1156 = vunpack.c.l.b16 %v1117
    %v1157 = vunpack.c.l.b16 %v1118
    %v1158 = vunpack.c.l.b16 %v1119
    %v1159 = vunpack.c.l.b16 %v1120
    %v1160 = vunpack.c.l.b16 %v1121
    %v1161 = vpack.c.b16 %v1146, %v1145
    %v1162 = vpack.c.b16 %v1148, %v1147
    %v1163 = vpack.c.b16 %v1150, %v1149
    %v1164 = vpack.c.b16 %v1152, %v1151
    %v1165 = vpack.c.b16 %v1154, %v1153
    %v1166 = vpack.c.b16 %v1156, %v1155
    %v1167 = vpack.c.b16 %v1158, %v1157
    %v1168 = vpack.c.b16 %v1160, %v1159
    %1177 = vmatprep.subr.bf16.mxu0 0
    %1178 = vmatpush1.bf16.msra.mxu0 %v1168
    %1179 = vmatprep.subr.bf16.mxu0 0
    %1180 = vmatpush1.bf16.msra.mxu0 %v1167
    %1181 = vmatprep.subr.bf16.mxu0 0
    %1182 = vmatpush1.bf16.msra.mxu0 %v1166
    %1183 = vmatprep.subr.bf16.mxu0 0
    %1184 = vmatpush1.bf16.msra.mxu0 %v1165
    %1185 = vmatprep.subr.bf16.mxu0 0
    %1186 = vmatpush1.bf16.msra.mxu0 %v1164
    %1187 = vmatprep.subr.bf16.mxu0 0
    %1188 = vmatpush1.bf16.msra.mxu0 %v1163
    %1189 = vmatprep.subr.bf16.mxu0 0
    %1190 = vmatpush1.bf16.msra.mxu0 %v1162
    %1191 = vmatprep.subr.bf16.mxu0 0
    %1192 = vmatpush1.bf16.msra.mxu0 %v1161
    %1193 = vmatprep.subr.bf16.mxu0 0
    %1194 = vmatpush2.bf16.msra.mxu0 0
    %1195 = vmatprep.subr.bf16.mxu0 0
    %1196 = vmatpush2.bf16.msra.mxu0 0
    %1197 = vmatprep.subr.bf16.mxu0 0
    %1198 = vmatpush2.bf16.msra.mxu0 0
    %1199 = vmatprep.subr.bf16.mxu0 0
    %1200 = vmatpush2.bf16.msra.mxu0 0
    %1201 = vmatprep.subr.bf16.mxu0 0
    %1202 = vmatpush2.bf16.msra.mxu0 0
    %1203 = vmatprep.subr.bf16.mxu0 0
    %1204 = vmatpush2.bf16.msra.mxu0 0
    %1205 = vmatprep.subr.bf16.mxu0 0
    %1206 = vmatpush2.bf16.msra.mxu0 0
    %1207 = vmatprep.subr.bf16.mxu0 0
    %1208 = vmatpush2.bf16.msra.mxu0 0
    %1209 = vmatprep.mubr.bf16.mxu0 0
    %1210 = vmatmul.mubr.bf16.gmra.mxu0 %v1104
    %v1211 = vpop.f32.mrf.mxu0
    %v1212 = vadd.f32 %v1127, %v1211
    %v1213 = vpop.f32.mrf.mxu0
    %v1214 = vpop.f32.mrf.mxu0
    %v1215 = vadd.f32 %v1127, %v1214
    %v1216 = vpop.f32.mrf.mxu0
    %1217 = vmatprep.mubr.bf16.mxu0 0
    %1218 = vmatmul.mubr.bf16.gmra.mxu0 %v1105
    %v1219 = vpop.f32.mrf.mxu0
    %v1220 = vadd.f32 %v1127, %v1219
    %v1221 = vpop.f32.mrf.mxu0
    %v1222 = vpop.f32.mrf.mxu0
    %v1223 = vadd.f32 %v1127, %v1222
    %v1224 = vpop.f32.mrf.mxu0
    %1225 = vdwg.mxu0
    %v1226 = vtanh.pop %v1212
    %v1227 = vtanh.pop %v1215
    %v1228 = vtanh.pop %v1220
    %v1229 = vtanh.pop %v1223
    %v1230 = vld [vmem:[%s15] sm:$0xf]
    %v1231 = vpack.c.bf16 %v1227, %v1226
    %v1232 = vpack.c.bf16 %v1229, %v1228
    %vm1233 = vcmask 261120
    %v1235 = vsel %vm1233, %v1230, 0
    %1237 = vmatprep.subr.bf16.mxu0 0
    %1238 = vmatpush1.bf16.msra.mxu0 0
    %1239 = vmatprep.subr.bf16.mxu0 0
    %1240 = vmatpush1.bf16.msra.mxu0 0
    %1241 = vmatprep.subr.bf16.mxu0 0
    %1242 = vmatpush1.bf16.msra.mxu0 0
    %1243 = vmatprep.subr.bf16.mxu0 0
    %1244 = vmatpush1.bf16.msra.mxu0 0
    %1245 = vmatprep.subr.bf16.mxu0 0
    %1246 = vmatpush1.bf16.msra.mxu0 0
    %1247 = vmatprep.subr.bf16.mxu0 0
    %1248 = vmatpush1.bf16.msra.mxu0 0
    %1249 = vmatprep.subr.bf16.mxu0 0
    %1250 = vmatpush1.bf16.msra.mxu0 %v1232
    %1251 = vmatprep.subr.bf16.mxu0 0
    %1252 = vmatpush1.bf16.msra.mxu0 %v1231
    %1253 = vmatprep.subr.bf16.mxu0 0
    %1254 = vmatpush2.bf16.msra.mxu0 0
    %1255 = vmatprep.subr.bf16.mxu0 0
    %1256 = vmatpush2.bf16.msra.mxu0 0
    %1257 = vmatprep.subr.bf16.mxu0 0
    %1258 = vmatpush2.bf16.msra.mxu0 0
    %1259 = vmatprep.subr.bf16.mxu0 0
    %1260 = vmatpush2.bf16.msra.mxu0 0
    %1261 = vmatprep.subr.bf16.mxu0 0
    %1262 = vmatpush2.bf16.msra.mxu0 0
    %1263 = vmatprep.subr.bf16.mxu0 0
    %1264 = vmatpush2.bf16.msra.mxu0 0
    %1265 = vmatprep.subr.bf16.mxu0 0
    %1266 = vmatpush2.bf16.msra.mxu0 0
    %1267 = vmatprep.subr.bf16.mxu0 0
    %1268 = vmatpush2.bf16.msra.mxu0 0
    %1269 = vmatprep.mubr.bf16.mxu0 0
    %1270 = vmatmul.mubr.bf16.gmra.mxu0 %v1235
    %v1271 = vpop.f32.mrf.mxu0
    %v1272 = vadd.f32 0.0, %v1271
    %v1273 = vpop.f32.mrf.mxu0
    %v1274 = vpop.f32.mrf.mxu0
    %v1275 = vpop.f32.mrf.mxu0
    %1276 = vdwg.mxu0
    %1277 = vmatprep.subr.bf16.mxu0 0
    %1278 = vmatpush1.bf16.msra.mxu0 0
    %1279 = vmatprep.subr.bf16.mxu0 0
    %1280 = vmatpush1.bf16.msra.mxu0 0
    %1281 = vmatprep.subr.bf16.mxu0 0
    %1282 = vmatpush1.bf16.msra.mxu0 0
    %1283 = vmatprep.subr.bf16.mxu0 0
    %1284 = vmatpush1.bf16.msra.mxu0 0
    %1285 = vmatprep.subr.bf16.mxu0 0
    %1286 = vmatpush1.bf16.msra.mxu0 0
    %1287 = vmatprep.subr.bf16.mxu0 0
    %1288 = vmatpush1.bf16.msra.mxu0 0
    %1289 = vmatprep.subr.bf16.mxu0 0
    %1290 = vmatpush1.bf16.msra.mxu0 %v1105
    %1291 = vmatprep.subr.bf16.mxu0 0
    %1292 = vmatpush1.bf16.msra.mxu0 %v1104
    %1293 = vmatprep.subr.bf16.mxu0 0
    %1294 = vmatpush2.bf16.msra.mxu0 0
    %1295 = vmatprep.subr.bf16.mxu0 0
    %1296 = vmatpush2.bf16.msra.mxu0 0
    %1297 = vmatprep.subr.bf16.mxu0 0
    %1298 = vmatpush2.bf16.msra.mxu0 0
    %1299 = vmatprep.subr.bf16.mxu0 0
    %1300 = vmatpush2.bf16.msra.mxu0 0
    %1301 = vmatprep.subr.bf16.mxu0 0
    %1302 = vmatpush2.bf16.msra.mxu0 0
    %1303 = vmatprep.subr.bf16.mxu0 0
    %1304 = vmatpush2.bf16.msra.mxu0 0
    %1305 = vmatprep.subr.bf16.mxu0 0
    %1306 = vmatpush2.bf16.msra.mxu0 0
    %1307 = vmatprep.subr.bf16.mxu0 0
    %1308 = vmatpush2.bf16.msra.mxu0 0
    %1309 = vmatprep.mubr.bf16.mxu0 0
    %1310 = vmatmul.mubr.bf16.gmra.mxu0 %v1235
    %v1311 = vpop.f32.mrf.mxu0
    %v1312 = vadd.f32 0.0, %v1311
    %v1313 = vpop.f32.mrf.mxu0
    %v1314 = vpop.f32.mrf.mxu0
    %v1315 = vpop.f32.mrf.mxu0
    %1316 = vdwg.mxu0
    %v1317 = vld [vmem:[%s17] sm:$0x1]
    %v1319 = vlaneseq
    %v1320 = vshrl.u32 %v1319, 7
    %v1321 = vsub.s32 0, %v1320
    %v1322 = vrot.slane %v1317, %v1321
    %v1324 = vmul.f32 %v1272, %v1322
    %1325 = vadd.xlane.f32.xlu0 %v1324
    %v1326 = vpop.xlane.xlu0 %1325
    %v1327 = vsel %vm742, %v1326, -inf
    %v1328 = vrot.slane %v1327, 4
    %v1329 = vmax.f32 %v1327, %v1328
    %v1330 = vrot.slane %v1329, 2
    %v1331 = vmax.f32 %v1329, %v1330
    %v1332 = vrot.slane %v1331, 1
    %v1333 = vmax.f32 %v1331, %v1332
    %v1334 = vsub.f32 %v1326, %v1333
    %v1335 = vmul.f32 %v1334, 1.442695
    %v1336 = vpow.pop %v1335
    %v1337 = vsel %vm742, %v1336, 0.0
    %v1338 = vrot.slane %v1337, 4
    %v1339 = vadd.f32 %v1337, %v1338
    %v1340 = vrot.slane %v1339, 2
    %v1341 = vadd.f32 %v1339, %v1340
    %v1342 = vrot.slane %v1341, 1
    %v1343 = vadd.f32 %v1341, %v1342
    %v1344 = vrcp.pop %v1343
    %v1345 = vmul.f32 %v1336, %v1344
    %v1346 = vmul.f32 %v1345, %v1312
    %v1348 = vrot.slane %v1346, 1
    %v1350 = vadd.f32 %v1346, %v1348
    %v1351 = vrot.slane %v1346, 2
    %v1353 = vadd.f32 %v1350, %v1351
    %v1354 = vrot.slane %v1346, 3
    %v1356 = vadd.f32 %v1353, %v1354
    %v1357 = vld [vmem:[%s16] sm:$0x1]
    %v1358 = vpack.c.bf16 %v951, %v951
    %v1360 = vsel %vm728, %v1357, 0
    %v1363 = vsel %vm742, %v1358, 0
    %1365 = vmatprep.subr.bf16.mxu0 0
    %1366 = vmatpush1.bf16.msra.mxu0 0
    %1367 = vmatprep.subr.bf16.mxu0 0
    %1368 = vmatpush1.bf16.msra.mxu0 0
    %1369 = vmatprep.subr.bf16.mxu0 0
    %1370 = vmatpush1.bf16.msra.mxu0 0
    %1371 = vmatprep.subr.bf16.mxu0 0
    %1372 = vmatpush1.bf16.msra.mxu0 0
    %1373 = vmatprep.subr.bf16.mxu0 0
    %1374 = vmatpush1.bf16.msra.mxu0 0
    %1375 = vmatprep.subr.bf16.mxu0 0
    %1376 = vmatpush1.bf16.msra.mxu0 0
    %1377 = vmatprep.subr.bf16.mxu0 0
    %1378 = vmatpush1.bf16.msra.mxu0 0
    %1379 = vmatprep.subr.bf16.mxu0 0
    %1380 = vmatpush1.bf16.msra.mxu0 %v1363
    %1381 = vmatprep.subr.bf16.mxu0 0
    %1382 = vmatpush2.bf16.msra.mxu0 0
    %1383 = vmatprep.subr.bf16.mxu0 0
    %1384 = vmatpush2.bf16.msra.mxu0 0
    %1385 = vmatprep.subr.bf16.mxu0 0
    %1386 = vmatpush2.bf16.msra.mxu0 0
    %1387 = vmatprep.subr.bf16.mxu0 0
    %1388 = vmatpush2.bf16.msra.mxu0 0
    %1389 = vmatprep.subr.bf16.mxu0 0
    %1390 = vmatpush2.bf16.msra.mxu0 0
    %1391 = vmatprep.subr.bf16.mxu0 0
    %1392 = vmatpush2.bf16.msra.mxu0 0
    %1393 = vmatprep.subr.bf16.mxu0 0
    %1394 = vmatpush2.bf16.msra.mxu0 0
    %1395 = vmatprep.subr.bf16.mxu0 0
    %1396 = vmatpush2.bf16.msra.mxu0 0
    %1397 = vmatprep.mubr.bf16.mxu0 0
    %1398 = vmatmul.mubr.bf16.gmra.mxu0 %v1360
    %v1399 = vpop.f32.mrf.mxu0
    %v1400 = vadd.f32 0.0, %v1399
    %v1401 = vpop.f32.mrf.mxu0
    %v1402 = vpop.f32.mrf.mxu0
    %v1403 = vpop.f32.mrf.mxu0
    %1404 = vdwg.mxu0
    %v1405 = vpack.c.bf16 %v1400, %v1400
    %v1406 = vld [vmem:[#allocation14] sm:$0xff]
    %v1407 = vld [vmem:[#allocation14 + $0x8] sm:$0xff]
    %v1408 = vld [vmem:[#allocation14 + $0x10] sm:$0xff]
    %v1409 = vld [vmem:[#allocation14 + $0x18] sm:$0xff]
    %v1410 = vld [vmem:[#allocation14 + $0x20] sm:$0xff]
    %v1411 = vld [vmem:[#allocation14 + $0x28] sm:$0xff]
    %v1412 = vld [vmem:[#allocation14 + $0x30] sm:$0xff]
    %v1413 = vld [vmem:[#allocation14 + $0x38] sm:$0xff]
    %v1414 = vld [vmem:[#allocation14 + $0x40] sm:$0xff]
    %v1415 = vld [vmem:[#allocation14 + $0x48] sm:$0xff]
    %v1416 = vld [vmem:[#allocation14 + $0x50] sm:$0xff]
    %v1417 = vld [vmem:[#allocation14 + $0x58] sm:$0xff]
    %v1418 = vld [vmem:[#allocation14 + $0x60] sm:$0xff]
    %v1419 = vld [vmem:[#allocation14 + $0x68] sm:$0xff]
    %v1420 = vld [vmem:[#allocation14 + $0x70] sm:$0xff]
    %v1421 = vld [vmem:[#allocation14 + $0x78] sm:$0xff]
    %v1422 = vpack.c.bf16 %v1356, %v1356
    %v1423 = vld [vmem:[#allocation16] sm:$0xff]
    %v1424 = vld [vmem:[#allocation16 + $0x8] sm:$0xff]
    %v1425 = vld [vmem:[#allocation16 + $0x10] sm:$0xff]
    %v1426 = vld [vmem:[#allocation16 + $0x18] sm:$0xff]
    %v1427 = vld [vmem:[#allocation16 + $0x20] sm:$0xff]
    %v1428 = vld [vmem:[#allocation16 + $0x28] sm:$0xff]
    %v1429 = vld [vmem:[#allocation16 + $0x30] sm:$0xff]
    %v1430 = vld [vmem:[#allocation16 + $0x38] sm:$0xff]
    %v1431 = vld [vmem:[#allocation16 + $0x40] sm:$0xff]
    %v1432 = vld [vmem:[#allocation16 + $0x48] sm:$0xff]
    %v1433 = vld [vmem:[#allocation16 + $0x50] sm:$0xff]
    %v1434 = vld [vmem:[#allocation16 + $0x58] sm:$0xff]
    %v1435 = vld [vmem:[#allocation16 + $0x60] sm:$0xff]
    %v1436 = vld [vmem:[#allocation16 + $0x68] sm:$0xff]
    %v1437 = vld [vmem:[#allocation16 + $0x70] sm:$0xff]
    %v1438 = vld [vmem:[#allocation16 + $0x78] sm:$0xff]
    %v1455 = vunpack.c.l.b16 %v1423
    %v1456 = vunpack.c.h.b16 %v1423
    %v1457 = vunpack.c.l.b16 %v1424
    %v1458 = vunpack.c.h.b16 %v1424
    %v1459 = vunpack.c.l.b16 %v1425
    %v1460 = vunpack.c.h.b16 %v1425
    %v1461 = vunpack.c.l.b16 %v1426
    %v1462 = vunpack.c.h.b16 %v1426
    %v1463 = vunpack.c.l.b16 %v1427
    %v1464 = vunpack.c.h.b16 %v1427
    %v1465 = vunpack.c.l.b16 %v1428
    %v1466 = vunpack.c.h.b16 %v1428
    %v1467 = vunpack.c.l.b16 %v1429
    %v1468 = vunpack.c.h.b16 %v1429
    %v1469 = vunpack.c.l.b16 %v1430
    %v1470 = vunpack.c.h.b16 %v1430
    %v1471 = vunpack.c.l.b16 %v1431
    %v1472 = vunpack.c.h.b16 %v1431
    %v1473 = vunpack.c.l.b16 %v1432
    %v1474 = vunpack.c.h.b16 %v1432
    %v1475 = vunpack.c.l.b16 %v1433
    %v1476 = vunpack.c.h.b16 %v1433
    %v1477 = vunpack.c.l.b16 %v1434
    %v1478 = vunpack.c.h.b16 %v1434
    %v1479 = vunpack.c.l.b16 %v1435
    %v1480 = vunpack.c.h.b16 %v1435
    %v1481 = vunpack.c.l.b16 %v1436
    %v1482 = vunpack.c.h.b16 %v1436
    %v1483 = vunpack.c.l.b16 %v1437
    %v1484 = vunpack.c.h.b16 %v1437
    %v1485 = vunpack.c.l.b16 %v1438
    %v1486 = vunpack.c.h.b16 %v1438
    %v1487 = vpack.c.b16 %v1457, %v1455
    %v1488 = vpack.c.b16 %v1458, %v1456
    %v1489 = vpack.c.b16 %v1461, %v1459
    %v1490 = vpack.c.b16 %v1462, %v1460
    %v1491 = vpack.c.b16 %v1465, %v1463
    %v1492 = vpack.c.b16 %v1466, %v1464
    %v1493 = vpack.c.b16 %v1469, %v1467
    %v1494 = vpack.c.b16 %v1470, %v1468
    %v1495 = vpack.c.b16 %v1473, %v1471
    %v1496 = vpack.c.b16 %v1474, %v1472
    %v1497 = vpack.c.b16 %v1477, %v1475
    %v1498 = vpack.c.b16 %v1478, %v1476
    %v1499 = vpack.c.b16 %v1481, %v1479
    %v1500 = vpack.c.b16 %v1482, %v1480
    %v1501 = vpack.c.b16 %v1485, %v1483
    %v1502 = vpack.c.b16 %v1486, %v1484
    %1519 = vmatprep.subr.bf16.mxu0 %v1502
    %1520 = vmatpush1.bf16.msra.mxu0 %v1501
    %1521 = vmatprep.subr.bf16.mxu0 %v1500
    %1522 = vmatpush1.bf16.msra.mxu0 %v1499
    %1523 = vmatprep.subr.bf16.mxu0 %v1498
    %1524 = vmatpush1.bf16.msra.mxu0 %v1497
    %1525 = vmatprep.subr.bf16.mxu0 %v1496
    %1526 = vmatpush1.bf16.msra.mxu0 %v1495
    %1527 = vmatprep.subr.bf16.mxu0 %v1494
    %1528 = vmatpush1.bf16.msra.mxu0 %v1493
    %1529 = vmatprep.subr.bf16.mxu0 %v1492
    %1530 = vmatpush1.bf16.msra.mxu0 %v1491
    %1531 = vmatprep.subr.bf16.mxu0 %v1490
    %1532 = vmatpush1.bf16.msra.mxu0 %v1489
    %1533 = vmatprep.subr.bf16.mxu0 %v1488
    %1534 = vmatpush1.bf16.msra.mxu0 %v1487
    %1535 = vmatprep.subr.bf16.mxu0 0
    %1536 = vmatpush2.bf16.msra.mxu0 0
    %1537 = vmatprep.subr.bf16.mxu0 0
    %1538 = vmatpush2.bf16.msra.mxu0 0
    %1539 = vmatprep.subr.bf16.mxu0 0
    %1540 = vmatpush2.bf16.msra.mxu0 0
    %1541 = vmatprep.subr.bf16.mxu0 0
    %1542 = vmatpush2.bf16.msra.mxu0 0
    %1543 = vmatprep.subr.bf16.mxu0 0
    %1544 = vmatpush2.bf16.msra.mxu0 0
    %1545 = vmatprep.subr.bf16.mxu0 0
    %1546 = vmatpush2.bf16.msra.mxu0 0
    %1547 = vmatprep.subr.bf16.mxu0 0
    %1548 = vmatpush2.bf16.msra.mxu0 0
    %1549 = vmatprep.subr.bf16.mxu0 0
    %1550 = vmatpush2.bf16.msra.mxu0 0
    %1551 = vmatprep.mubr.bf16.mxu0 0
    %1552 = vmatmul.mubr.bf16.gmra.mxu0 %v1422
    %v1553 = vpop.f32.mrf.mxu0
    %v1554 = vadd.f32 0.0, %v1553
    %v1555 = vpop.f32.mrf.mxu0
    %v1556 = vadd.f32 0.0, %v1555
    %v1557 = vpop.f32.mrf.mxu0
    %v1558 = vpop.f32.mrf.mxu0
    %1559 = vdwg.mxu0
    %v1576 = vunpack.c.l.b16 %v1406
    %v1577 = vunpack.c.h.b16 %v1406
    %v1578 = vunpack.c.l.b16 %v1407
    %v1579 = vunpack.c.h.b16 %v1407
    %v1580 = vunpack.c.l.b16 %v1408
    %v1581 = vunpack.c.h.b16 %v1408
    %v1582 = vunpack.c.l.b16 %v1409
    %v1583 = vunpack.c.h.b16 %v1409
    %v1584 = vunpack.c.l.b16 %v1410
    %v1585 = vunpack.c.h.b16 %v1410
    %v1586 = vunpack.c.l.b16 %v1411
    %v1587 = vunpack.c.h.b16 %v1411
    %v1588 = vunpack.c.l.b16 %v1412
    %v1589 = vunpack.c.h.b16 %v1412
    %v1590 = vunpack.c.l.b16 %v1413
    %v1591 = vunpack.c.h.b16 %v1413
    %v1592 = vunpack.c.l.b16 %v1414
    %v1593 = vunpack.c.h.b16 %v1414
    %v1594 = vunpack.c.l.b16 %v1415
    %v1595 = vunpack.c.h.b16 %v1415
    %v1596 = vunpack.c.l.b16 %v1416
    %v1597 = vunpack.c.h.b16 %v1416
    %v1598 = vunpack.c.l.b16 %v1417
    %v1599 = vunpack.c.h.b16 %v1417
    %v1600 = vunpack.c.l.b16 %v1418
    %v1601 = vunpack.c.h.b16 %v1418
    %v1602 = vunpack.c.l.b16 %v1419
    %v1603 = vunpack.c.h.b16 %v1419
    %v1604 = vunpack.c.l.b16 %v1420
    %v1605 = vunpack.c.h.b16 %v1420
    %v1606 = vunpack.c.l.b16 %v1421
    %v1607 = vunpack.c.h.b16 %v1421
    %v1608 = vpack.c.b16 %v1578, %v1576
    %v1609 = vpack.c.b16 %v1579, %v1577
    %v1610 = vpack.c.b16 %v1582, %v1580
    %v1611 = vpack.c.b16 %v1583, %v1581
    %v1612 = vpack.c.b16 %v1586, %v1584
    %v1613 = vpack.c.b16 %v1587, %v1585
    %v1614 = vpack.c.b16 %v1590, %v1588
    %v1615 = vpack.c.b16 %v1591, %v1589
    %v1616 = vpack.c.b16 %v1594, %v1592
    %v1617 = vpack.c.b16 %v1595, %v1593
    %v1618 = vpack.c.b16 %v1598, %v1596
    %v1619 = vpack.c.b16 %v1599, %v1597
    %v1620 = vpack.c.b16 %v1602, %v1600
    %v1621 = vpack.c.b16 %v1603, %v1601
    %v1622 = vpack.c.b16 %v1606, %v1604
    %v1623 = vpack.c.b16 %v1607, %v1605
    %1640 = vmatprep.subr.bf16.mxu0 %v1623
    %1641 = vmatpush1.bf16.msra.mxu0 %v1622
    %1642 = vmatprep.subr.bf16.mxu0 %v1621
    %1643 = vmatpush1.bf16.msra.mxu0 %v1620
    %1644 = vmatprep.subr.bf16.mxu0 %v1619
    %1645 = vmatpush1.bf16.msra.mxu0 %v1618
    %1646 = vmatprep.subr.bf16.mxu0 %v1617
    %1647 = vmatpush1.bf16.msra.mxu0 %v1616
    %1648 = vmatprep.subr.bf16.mxu0 %v1615
    %1649 = vmatpush1.bf16.msra.mxu0 %v1614
    %1650 = vmatprep.subr.bf16.mxu0 %v1613
    %1651 = vmatpush1.bf16.msra.mxu0 %v1612
    %1652 = vmatprep.subr.bf16.mxu0 %v1611
    %1653 = vmatpush1.bf16.msra.mxu0 %v1610
    %1654 = vmatprep.subr.bf16.mxu0 %v1609
    %1655 = vmatpush1.bf16.msra.mxu0 %v1608
    %1656 = vmatprep.subr.bf16.mxu0 0
    %1657 = vmatpush2.bf16.msra.mxu0 0
    %1658 = vmatprep.subr.bf16.mxu0 0
    %1659 = vmatpush2.bf16.msra.mxu0 0
    %1660 = vmatprep.subr.bf16.mxu0 0
    %1661 = vmatpush2.bf16.msra.mxu0 0
    %1662 = vmatprep.subr.bf16.mxu0 0
    %1663 = vmatpush2.bf16.msra.mxu0 0
    %1664 = vmatprep.subr.bf16.mxu0 0
    %1665 = vmatpush2.bf16.msra.mxu0 0
    %1666 = vmatprep.subr.bf16.mxu0 0
    %1667 = vmatpush2.bf16.msra.mxu0 0
    %1668 = vmatprep.subr.bf16.mxu0 0
    %1669 = vmatpush2.bf16.msra.mxu0 0
    %1670 = vmatprep.subr.bf16.mxu0 0
    %1671 = vmatpush2.bf16.msra.mxu0 0
    %1672 = vmatprep.mubr.bf16.mxu0 0
    %1673 = vmatmul.mubr.bf16.gmra.mxu0 %v1405
    %v1674 = vpop.f32.mrf.mxu0
    %v1675 = vadd.f32 %v1554, %v1674
    %v1676 = vpop.f32.mrf.mxu0
    %v1677 = vadd.f32 %v1556, %v1676
    %v1678 = vpop.f32.mrf.mxu0
    %v1679 = vpop.f32.mrf.mxu0
    %1680 = vdwg.mxu0
    %v1681 = vld [vmem:[%s20] sm:$0x1]
    %v1682 = vld [vmem:[#allocation17] sm:$0xff]
    %v1683 = vld [vmem:[#allocation17 + $0x8] sm:$0xff]
    %v1684 = vld [vmem:[#allocation17 + $0x10] sm:$0xff]
    %v1685 = vld [vmem:[#allocation17 + $0x18] sm:$0xff]
    %v1686 = vld [vmem:[#allocation17 + $0x20] sm:$0xff]
    %v1687 = vld [vmem:[#allocation17 + $0x28] sm:$0xff]
    %v1688 = vld [vmem:[#allocation17 + $0x30] sm:$0xff]
    %v1689 = vld [vmem:[#allocation17 + $0x38] sm:$0xff]
    %v1690 = vld [vmem:[#allocation17 + $0x40] sm:$0xff]
    %v1691 = vld [vmem:[#allocation17 + $0x48] sm:$0xff]
    %v1692 = vld [vmem:[#allocation17 + $0x50] sm:$0xff]
    %v1693 = vld [vmem:[#allocation17 + $0x58] sm:$0xff]
    %v1694 = vld [vmem:[#allocation17 + $0x60] sm:$0xff]
    %v1695 = vld [vmem:[#allocation17 + $0x68] sm:$0xff]
    %v1696 = vld [vmem:[#allocation17 + $0x70] sm:$0xff]
    %v1697 = vld [vmem:[#allocation17 + $0x78] sm:$0xff]
    %v1714 = vunpack.c.l.b16 %v1682
    %v1715 = vunpack.c.h.b16 %v1682
    %v1716 = vunpack.c.l.b16 %v1683
    %v1717 = vunpack.c.h.b16 %v1683
    %v1718 = vunpack.c.l.b16 %v1684
    %v1719 = vunpack.c.h.b16 %v1684
    %v1720 = vunpack.c.l.b16 %v1685
    %v1721 = vunpack.c.h.b16 %v1685
    %v1722 = vunpack.c.l.b16 %v1686
    %v1723 = vunpack.c.h.b16 %v1686
    %v1724 = vunpack.c.l.b16 %v1687
    %v1725 = vunpack.c.h.b16 %v1687
    %v1726 = vunpack.c.l.b16 %v1688
    %v1727 = vunpack.c.h.b16 %v1688
    %v1728 = vunpack.c.l.b16 %v1689
    %v1729 = vunpack.c.h.b16 %v1689
    %v1730 = vunpack.c.l.b16 %v1690
    %v1731 = vunpack.c.h.b16 %v1690
    %v1732 = vunpack.c.l.b16 %v1691
    %v1733 = vunpack.c.h.b16 %v1691
    %v1734 = vunpack.c.l.b16 %v1692
    %v1735 = vunpack.c.h.b16 %v1692
    %v1736 = vunpack.c.l.b16 %v1693
    %v1737 = vunpack.c.h.b16 %v1693
    %v1738 = vunpack.c.l.b16 %v1694
    %v1739 = vunpack.c.h.b16 %v1694
    %v1740 = vunpack.c.l.b16 %v1695
    %v1741 = vunpack.c.h.b16 %v1695
    %v1742 = vunpack.c.l.b16 %v1696
    %v1743 = vunpack.c.h.b16 %v1696
    %v1744 = vunpack.c.l.b16 %v1697
    %v1745 = vunpack.c.h.b16 %v1697
    %v1746 = vpack.c.b16 %v1716, %v1714
    %v1747 = vpack.c.b16 %v1717, %v1715
    %v1748 = vpack.c.b16 %v1720, %v1718
    %v1749 = vpack.c.b16 %v1721, %v1719
    %v1750 = vpack.c.b16 %v1724, %v1722
    %v1751 = vpack.c.b16 %v1725, %v1723
    %v1752 = vpack.c.b16 %v1728, %v1726
    %v1753 = vpack.c.b16 %v1729, %v1727
    %v1754 = vpack.c.b16 %v1732, %v1730
    %v1755 = vpack.c.b16 %v1733, %v1731
    %v1756 = vpack.c.b16 %v1736, %v1734
    %v1757 = vpack.c.b16 %v1737, %v1735
    %v1758 = vpack.c.b16 %v1740, %v1738
    %v1759 = vpack.c.b16 %v1741, %v1739
    %v1760 = vpack.c.b16 %v1744, %v1742
    %v1761 = vpack.c.b16 %v1745, %v1743
    %1778 = vmatprep.subr.bf16.mxu0 %v1761
    %1779 = vmatpush1.bf16.msra.mxu0 %v1760
    %1780 = vmatprep.subr.bf16.mxu0 %v1759
    %1781 = vmatpush1.bf16.msra.mxu0 %v1758
    %1782 = vmatprep.subr.bf16.mxu0 %v1757
    %1783 = vmatpush1.bf16.msra.mxu0 %v1756
    %1784 = vmatprep.subr.bf16.mxu0 %v1755
    %1785 = vmatpush1.bf16.msra.mxu0 %v1754
    %1786 = vmatprep.subr.bf16.mxu0 %v1753
    %1787 = vmatpush1.bf16.msra.mxu0 %v1752
    %1788 = vmatprep.subr.bf16.mxu0 %v1751
    %1789 = vmatpush1.bf16.msra.mxu0 %v1750
    %1790 = vmatprep.subr.bf16.mxu0 %v1749
    %1791 = vmatpush1.bf16.msra.mxu0 %v1748
    %1792 = vmatprep.subr.bf16.mxu0 %v1747
    %1793 = vmatpush1.bf16.msra.mxu0 %v1746
    %1794 = vmatprep.subr.bf16.mxu0 0
    %1795 = vmatpush2.bf16.msra.mxu0 0
    %1796 = vmatprep.subr.bf16.mxu0 0
    %1797 = vmatpush2.bf16.msra.mxu0 0
    %1798 = vmatprep.subr.bf16.mxu0 0
    %1799 = vmatpush2.bf16.msra.mxu0 0
    %1800 = vmatprep.subr.bf16.mxu0 0
    %1801 = vmatpush2.bf16.msra.mxu0 0
    %1802 = vmatprep.subr.bf16.mxu0 0
    %1803 = vmatpush2.bf16.msra.mxu0 0
    %1804 = vmatprep.subr.bf16.mxu0 0
    %1805 = vmatpush2.bf16.msra.mxu0 0
    %1806 = vmatprep.subr.bf16.mxu0 0
    %1807 = vmatpush2.bf16.msra.mxu0 0
    %1808 = vmatprep.subr.bf16.mxu0 0
    %1809 = vmatpush2.bf16.msra.mxu0 0
    %1810 = vmatprep.mubr.bf16.mxu0 0
    %1811 = vmatmul.mubr.bf16.gmra.mxu0 %v1681
    %v1812 = vpop.f32.mrf.mxu0
    %v1813 = vadd.f32 0.0, %v1812
    %v1814 = vpop.f32.mrf.mxu0
    %v1815 = vadd.f32 0.0, %v1814
    %v1816 = vpop.f32.mrf.mxu0
    %v1817 = vpop.f32.mrf.mxu0
    %1818 = vdwg.mxu0
    %v1819 = vadd.f32 %v1675, %v1813
    %v1820 = vadd.f32 %v1677, %v1815
    %v1821 = vld [vmem:[%s24] sm:$0x3]
    %v1823 = vlaneseq
    %v1824 = vshrl.u32 %v1823, 7
    %v1825 = vsub.s32 0, %v1824
    %v1826 = vrot.slane %v1821, %v1825
    %v1827 = vlaneseq
    %v1828 = vshrl.u32 %v1827, 7
    %v1829 = vsub.s32 1, %v1828
    %v1830 = vrot.slane %v1821, %v1829
    %v1833 = vadd.f32 %v1819, %v1826
    %v1834 = vadd.f32 %v1820, %v1830
    %v1837 = vcombine.low %v1833, %v1834
    %v1839 = vunpack.c.l.s4 1966171168
    %v1840 = vunpack.c.0.s8 %v1839
    %v1841 = vlaneseq
    %v1842 = vshrl.u32 %v1841, 7
    %v1843 = vsub.s32 %v1840, %v1842
    %v1844 = vrot.slane %v1837, %v1843
    %v1846 = vunpack.c.l.s4 1966171168
    %v1847 = vunpack.c.0.s8 %v1846
    %v1848 = vlaneseq
    %v1849 = vshrl.u32 %v1848, 7
    %v1850 = vsub.s32 %v1847, %v1849
    %v1851 = vrot.slane %v1844, %v1850
    %v1853 = vlaneseq
    %vm1854 = vcmp.ge.s32.totalorder %v1853, 0
    %vm1855 = vcmp.lt.s32.totalorder %v1853, 256
    %vm1856 = vmand %vm1854, %vm1855
    %1857 = vst.msk [vmem:[#allocation19] sm:$0x3] %vm1856, %v1851
    // Predicated region
    $region142: #{tpu_custom_call.1} parent=1 // pred_check
      _
    $region143: #{tpu_custom_call.1} parent=1 // pred_check_branch
      %1859 = sbr.rel (0) target = $region145
    $region144: #{tpu_custom_call.1} parent=1 // pred_region
      %s1861 = ssub.s32 32, 32
      %1862 = vsyncadd [#allocation4], %s1861
      %s1864 = sshll.u32 [#allocation19], 4
      %s1865 = int_to_ptr.vmem [resolvable:$true] %s1864
      %1867 = dma.vmem_to_hbm [thread:$0]  %s1865, 32, %s25, [#allocation4]
    $region145: #{tpu_custom_call.1} parent=1 // pred_fallthru
      _
    // Predicated region
    $region146: #{tpu_custom_call.1} parent=1 // pred_check
      _
    $region147: #{tpu_custom_call.1} parent=1 // pred_check_branch
      %1869 = sbr.rel (0) target = $region149
    $region148: #{tpu_custom_call.1} parent=1 // pred_region
      %1870 = dma.done [#allocation4], 32
    $region149: #{tpu_custom_call.1} parent=1 // pred_fallthru
      _
    %1871 = vsyncpa [#allocation3], 1
    %1872 = vsyncpa [#allocation6], 1
    %1873 = vsyncpa [#allocation9], 1
    %1874 = vsyncpa [#allocation12], 1
    %1875 = vsyncpa [#allocation15], 1
    %1876 = vsyncpa [#allocation18], 1
    %1877 = vsyncpa [#allocation4], 1

</llo_original>
